<compile_context>
chip_gen: v7x
topology: tpu7x:2x2x1
jax: 0.10.0
libtpu: 0.0.40
codegen_flags: <defaults>
</compile_context>

<pallas_src>
import functools

import jax
import jax.numpy as jnp
from jax.experimental import pallas as pl
from jax.experimental.pallas import tpu as pltpu

_LANE = 128


def _round_up(x, m):
    return (x + m - 1) // m * m


def _conv_stats_kernel(x_ref, w_ref, conv_ref, sum_ref, sq_ref,
                       xpad_ref, patch_ref,
                       *, K, stride, pad, dilation, H, W, Ho, Wo, Cin):
    # x_ref:     (1, H, W, Cin)       bf16, un-padded NHWC slab for one batch element
    # w_ref:     (K*K*Cin, Cout_pad)  bf16, im2col-folded weights (Cout zero-padded to 128)
    # conv_ref:  (Ho*Wo, Cout_pad)    f32, raw conv output (lane-dense flat rows)
    # sum_ref:   (1, 1, Cout_pad)     f32, per-channel sum for this batch element
    # sq_ref:    (1, 1, Cout_pad)     f32, per-channel sum of squares
    # xpad_ref:  (Hp, Wp, Cin)        f32 scratch, zero-padded input (replaces wrapper jnp.pad)
    # patch_ref: (Ho*Wo, K*K*Cin)     f32 scratch, im2col patch

    # Zero-pad in VMEM instead of a full HBM read+write pass in the wrapper.
    xpad_ref[...] = jnp.zeros_like(xpad_ref)
    xpad_ref[pl.ds(pad, H), pl.ds(pad, W), :] = x_ref[0].astype(jnp.float32)

    def _sl(start, size):
        # stride==1 path (the common case) uses a plain contiguous slice.
        return pl.ds(start, size) if stride == 1 else pl.ds(start, size, stride)

    # im2col: one small lane-offset store per tap, then a single big-contraction matmul.
    for kh in range(K):
        for kw in range(K):
            t = kh * K + kw
            win = xpad_ref[_sl(kh * dilation, Ho), _sl(kw * dilation, Wo), :]
            patch_ref[:, pl.ds(t * Cin, Cin)] = win.reshape(Ho * Wo, Cin)

    patch = patch_ref[...].astype(jnp.bfloat16)                 # (Ho*Wo, K*K*Cin)
    acc = jnp.dot(patch, w_ref[...],
                  preferred_element_type=jnp.float32)           # (Ho*Wo, Cout_pad) f32

    conv_ref[...] = acc
    sum_ref[0] = jnp.sum(acc, axis=0, keepdims=True)
    sq_ref[0] = jnp.sum(acc * acc, axis=0, keepdims=True)


def _bn_relu_kernel(conv_ref, scale_ref, shift_ref, out_ref, *, has_relu):
    # conv_ref/out_ref: (TR, Cout_pad) f32 (aliased in place); scale/shift: (1, Cout_pad) f32
    y = conv_ref[...] * scale_ref[...] + shift_ref[...]
    if has_relu:
        y = jnp.maximum(y, 0.0)
    out_ref[...] = y.astype(out_ref.dtype)


def _pick_row_tile(rows):
    for cand in (1024, 512, 256, 128, 64, 32, 16, 8):
        if cand <= rows and rows % cand == 0:
            return cand
    return rows  # tiny case: single full block


@functools.partial(jax.jit, static_argnames=(
    "stride", "pad", "dilation", "bn_eps", "has_bn", "has_relu"))
def conv_bn_relu(x_nchw, weight_oihw, gamma, beta, *, stride=1, pad=1,
                 dilation=1, bn_eps=1e-5, has_bn=True, has_relu=True):
    N, Cin, H, W = x_nchw.shape
    Cout, Cin_w, K, K2 = weight_oihw.shape
    assert K == K2 and Cin_w == Cin
    Ho = (H + 2 * pad - dilation * (K - 1) - 1) // stride + 1
    Wo = (W + 2 * pad - dilation * (K - 1) - 1) // stride + 1
    Hp, Wp = H + 2 * pad, W + 2 * pad
    KKC = K * K * Cin
    Cout_pad = _round_up(Cout, _LANE)

    # Single fused NCHW->NHWC transpose + bf16 cast (halves input HBM traffic; padding
    # is NOT done here — it is done in VMEM inside the kernel).
    x = jnp.transpose(x_nchw, (0, 2, 3, 1)).astype(jnp.bfloat16)
    # OIHW -> (K*K*Cin, Cout) im2col weights, zero-padded to a lane-dense Cout.
    w = jnp.transpose(weight_oihw, (2, 3, 1, 0)).reshape(KKC, Cout)
    w = jnp.pad(w, ((0, 0), (0, Cout_pad - Cout))).astype(jnp.bfloat16)

    conv_flat, ch_sum, ch_sq = pl.pallas_call(
        functools.partial(_conv_stats_kernel, K=K, stride=stride, pad=pad,
                          dilation=dilation, H=H, W=W, Ho=Ho, Wo=Wo, Cin=Cin),
        out_shape=(
            jax.ShapeDtypeStruct((N * Ho * Wo, Cout_pad), jnp.float32),
            jax.ShapeDtypeStruct((N, 1, Cout_pad), jnp.float32),
            jax.ShapeDtypeStruct((N, 1, Cout_pad), jnp.float32),
        ),
        grid=(N,),
        in_specs=[
            pl.BlockSpec((1, H, W, Cin), lambda b: (b, 0, 0, 0)),
            pl.BlockSpec((KKC, Cout_pad), lambda b: (0, 0)),
        ],
        out_specs=(
            pl.BlockSpec((Ho * Wo, Cout_pad), lambda b: (b, 0)),
            pl.BlockSpec((1, 1, Cout_pad), lambda b: (b, 0, 0)),
            pl.BlockSpec((1, 1, Cout_pad), lambda b: (b, 0, 0)),
        ),
        scratch_shapes=[
            pltpu.VMEM((Hp, Wp, Cin), jnp.float32),       # zero-padded input
            pltpu.VMEM((Ho * Wo, KKC), jnp.float32),      # im2col patch
        ],
        compiler_params=pltpu.CompilerParams(dimension_semantics=("parallel",)),
    )(x, w)

    if has_bn:
        # BatchNorm2d training-mode forward: batch mean / biased variance over (N, H, W).
        count = jnp.float32(N * Ho * Wo)
        s = jnp.sum(ch_sum[:, 0, :Cout], axis=0)
        sq = jnp.sum(ch_sq[:, 0, :Cout], axis=0)
        mean = s / count
        var = jnp.maximum(sq / count - mean * mean, 0.0)   # clamp tiny negative from cancellation
        scale = gamma.astype(jnp.float32) * jax.lax.rsqrt(var + bn_eps)
        shift = beta.astype(jnp.float32) - mean * scale
    else:
        scale = jnp.ones((Cout,), jnp.float32)
        shift = jnp.zeros((Cout,), jnp.float32)
    scale_row = jnp.pad(scale, (0, Cout_pad - Cout)).reshape(1, Cout_pad)
    shift_row = jnp.pad(shift, (0, Cout_pad - Cout)).reshape(1, Cout_pad)

    rows = N * Ho * Wo
    TR = _pick_row_tile(rows)
    out_flat = pl.pallas_call(
        functools.partial(_bn_relu_kernel, has_relu=has_relu),
        out_shape=jax.ShapeDtypeStruct((rows, Cout_pad), jnp.float32),
        grid=(rows // TR,),
        in_specs=[
            pl.BlockSpec((TR, Cout_pad), lambda i: (i, 0)),
            pl.BlockSpec((1, Cout_pad), lambda i: (0, 0)),
            pl.BlockSpec((1, Cout_pad), lambda i: (0, 0)),
        ],
        out_specs=pl.BlockSpec((TR, Cout_pad), lambda i: (i, 0)),
        input_output_aliases={0: 0},   # BN+ReLU in place on the conv buffer
        compiler_params=pltpu.CompilerParams(dimension_semantics=("parallel",)),
    )(conv_flat, scale_row, shift_row)

    out = out_flat.reshape(N, Ho, Wo, Cout_pad)[..., :Cout]
    return jnp.transpose(out, (0, 3, 1, 2))                      # NHWC -> NCHW


def _reference(x, w, gamma, beta, *, stride, pad, dilation, eps):
    y = jax.lax.conv_general_dilated(
        x, w, window_strides=(stride, stride),
        padding=((pad, pad), (pad, pad)),
        rhs_dilation=(dilation, dilation),
        dimension_numbers=("NCHW", "OIHW", "NCHW"))
    mean = jnp.mean(y, axis=(0, 2, 3))
    var = jnp.var(y, axis=(0, 2, 3))                 # biased, matches BN training mode
    y = (y - mean[None, :, None, None]) / jnp.sqrt(var + eps)[None, :, None, None]
    y = y * gamma[None, :, None, None] + beta[None, :, None, None]
    return jnp.maximum(y, 0.0)


if __name__ == "__main__":
    # ConvBnRelu(in_planes=4, out_planes=8, ksize=3, stride=1, pad=1)
    N, Cin, H, W = 2, 4, 16, 16
    Cout, K, stride, pad, dilation = 8, 3, 1, 1, 1
    bn_eps = 1e-5

    key = jax.random.PRNGKey(0)
    kx, kw, kg, kb = jax.random.split(key, 4)
    x = jax.random.normal(kx, (N, Cin, H, W), jnp.float32)
    weight = jax.random.normal(kw, (Cout, Cin, K, K), jnp.float32) * 0.1
    gamma = 1.0 + 0.1 * jax.random.normal(kg, (Cout,), jnp.float32)
    beta = 0.1 * jax.random.normal(kb, (Cout,), jnp.float32)

    out = conv_bn_relu(x, weight, gamma, beta, stride=stride, pad=pad,
                       dilation=dilation, bn_eps=bn_eps,
                       has_bn=True, has_relu=True)
    out = jax.block_until_ready(out)
    assert out.shape == (N, Cout, H, W), out.shape

    # Tight check: reference fed the same bf16-rounded conv inputs (isolates kernel
    # correctness from the bf16 MXU precision policy).
    x_r = x.astype(jnp.bfloat16).astype(jnp.float32)
    w_r = weight.astype(jnp.bfloat16).astype(jnp.float32)
    ref_bf16 = _reference(x_r, w_r, gamma, beta, stride=stride, pad=pad,
                          dilation=dilation, eps=bn_eps)
    err_tight = float(jnp.max(jnp.abs(out - ref_bf16)))
    # Loose sanity check against the pure-f32 PyTorch-equivalent reference.
    ref_f32 = _reference(x, weight, gamma, beta, stride=stride, pad=pad,
                         dilation=dilation, eps=bn_eps)
    err_loose = float(jnp.max(jnp.abs(out - ref_f32)))

    assert err_tight < 2e-3, f"max abs err vs bf16-rounded ref = {err_tight}"
    assert err_loose < 5e-2, f"max abs err vs f32 ref = {err_loose}"
    print("KERNEL_OK")
</pallas_src>

<mosaic_0001>
module attributes {stable_mosaic.version = 11 : i64} {
  func.func @_conv_stats_kernel(%arg0: i32, %arg1: memref<1x16x16x4xbf16, #tpu.memory_space<vmem>>, %arg2: memref<36x128xbf16, #tpu.memory_space<vmem>>, %arg3: memref<256x128xf32, #tpu.memory_space<vmem>>, %arg4: memref<1x1x128xf32, #tpu.memory_space<vmem>>, %arg5: memref<1x1x128xf32, #tpu.memory_space<vmem>>, %arg6: memref<18x18x4xf32, #tpu.memory_space<vmem>>, %arg7: memref<256x36xf32, #tpu.memory_space<vmem>>) attributes {dimension_semantics = [#tpu.dimension_semantics<parallel>], iteration_bounds = array<i64: 2>, scalar_prefetch = 0 : i64, scratch_operands = 2 : i64, tpu.core_type = #tpu.core_type<tc>, window_params = [{transform_indices = @transform_0, window_bounds = array<i64: 1, 16, 16, 4>}, {pipeline_mode = #tpu.pipeline_mode<synchronous>, transform_indices = @transform_1, window_bounds = array<i64: 36, 128>}, {transform_indices = @transform_2, window_bounds = array<i64: 256, 128>}, {transform_indices = @transform_3, window_bounds = array<i64: 1, 1, 128>}, {transform_indices = @transform_4, window_bounds = array<i64: 1, 1, 128>}]} {
    %cst = arith.constant 0.000000e+00 : f32
    %0 = vector.broadcast %cst : f32 to vector<18x18x4xf32>
    %c0 = arith.constant 0 : index
    %c0_0 = arith.constant 0 : index
    %c0_1 = arith.constant 0 : index
    %1 = vector.load %arg6[%c0, %c0_0, %c0_1] : memref<18x18x4xf32, #tpu.memory_space<vmem>>, vector<18x18x4xf32>
    tpu.vector_store %arg6[%c0, %c0_0, %c0_1], %0 {strides = array<i32>} : memref<18x18x4xf32, #tpu.memory_space<vmem>>, vector<18x18x4xf32>,
    %c0_2 = arith.constant 0 : index
    %c0_3 = arith.constant 0 : index
    %c0_4 = arith.constant 0 : index
    %c0_5 = arith.constant 0 : index
    %2 = vector.load %arg1[%c0_2, %c0_3, %c0_4, %c0_5] : memref<1x16x16x4xbf16, #tpu.memory_space<vmem>>, vector<1x16x16x4xbf16>
    %3 = vector.shape_cast %2 : vector<1x16x16x4xbf16> to vector<16x16x4xbf16>
    %4 = arith.extf %3 : vector<16x16x4xbf16> to vector<16x16x4xf32>
    %c1 = arith.constant 1 : index
    %c1_6 = arith.constant 1 : index
    %c0_7 = arith.constant 0 : index
    %5 = vector.load %arg6[%c1, %c1_6, %c0_7] : memref<18x18x4xf32, #tpu.memory_space<vmem>>, vector<16x16x4xf32>
    tpu.vector_store %arg6[%c1, %c1_6, %c0_7], %4 {strides = array<i32>} : memref<18x18x4xf32, #tpu.memory_space<vmem>>, vector<16x16x4xf32>,
    %c0_8 = arith.constant 0 : index
    %c0_9 = arith.constant 0 : index
    %c0_10 = arith.constant 0 : index
    %6 = vector.load %arg6[%c0_8, %c0_9, %c0_10] : memref<18x18x4xf32, #tpu.memory_space<vmem>>, vector<16x16x4xf32>
    %7 = vector.shape_cast %6 : vector<16x16x4xf32> to vector<256x4xf32>
    %c0_11 = arith.constant 0 : index
    %c0_12 = arith.constant 0 : index
    %8 = vector.load %arg7[%c0_11, %c0_12] : memref<256x36xf32, #tpu.memory_space<vmem>>, vector<256x4xf32>
    tpu.vector_store %arg7[%c0_11, %c0_12], %7 {strides = array<i32>} : memref<256x36xf32, #tpu.memory_space<vmem>>, vector<256x4xf32>,
    %c0_13 = arith.constant 0 : index
    %c1_14 = arith.constant 1 : index
    %c0_15 = arith.constant 0 : index
    %9 = vector.load %arg6[%c0_13, %c1_14, %c0_15] : memref<18x18x4xf32, #tpu.memory_space<vmem>>, vector<16x16x4xf32>
    %10 = vector.shape_cast %9 : vector<16x16x4xf32> to vector<256x4xf32>
    %c0_16 = arith.constant 0 : index
    %c4 = arith.constant 4 : index
    %11 = vector.load %arg7[%c0_16, %c4] : memref<256x36xf32, #tpu.memory_space<vmem>>, vector<256x4xf32>
    tpu.vector_store %arg7[%c0_16, %c4], %10 {strides = array<i32>} : memref<256x36xf32, #tpu.memory_space<vmem>>, vector<256x4xf32>,
    %c0_17 = arith.constant 0 : index
    %c2 = arith.constant 2 : index
    %c0_18 = arith.constant 0 : index
    %12 = vector.load %arg6[%c0_17, %c2, %c0_18] : memref<18x18x4xf32, #tpu.memory_space<vmem>>, vector<16x16x4xf32>
    %13 = vector.shape_cast %12 : vector<16x16x4xf32> to vector<256x4xf32>
    %c0_19 = arith.constant 0 : index
    %c8 = arith.constant 8 : index
    %14 = vector.load %arg7[%c0_19, %c8] : memref<256x36xf32, #tpu.memory_space<vmem>>, vector<256x4xf32>
    tpu.vector_store %arg7[%c0_19, %c8], %13 {strides = array<i32>} : memref<256x36xf32, #tpu.memory_space<vmem>>, vector<256x4xf32>,
    %c1_20 = arith.constant 1 : index
    %c0_21 = arith.constant 0 : index
    %c0_22 = arith.constant 0 : index
    %15 = vector.load %arg6[%c1_20, %c0_21, %c0_22] : memref<18x18x4xf32, #tpu.memory_space<vmem>>, vector<16x16x4xf32>
    %16 = vector.shape_cast %15 : vector<16x16x4xf32> to vector<256x4xf32>
    %c0_23 = arith.constant 0 : index
    %c12 = arith.constant 12 : index
    %17 = vector.load %arg7[%c0_23, %c12] : memref<256x36xf32, #tpu.memory_space<vmem>>, vector<256x4xf32>
    tpu.vector_store %arg7[%c0_23, %c12], %16 {strides = array<i32>} : memref<256x36xf32, #tpu.memory_space<vmem>>, vector<256x4xf32>,
    %c1_24 = arith.constant 1 : index
    %c1_25 = arith.constant 1 : index
    %c0_26 = arith.constant 0 : index
    %18 = vector.load %arg6[%c1_24, %c1_25, %c0_26] : memref<18x18x4xf32, #tpu.memory_space<vmem>>, vector<16x16x4xf32>
    %19 = vector.shape_cast %18 : vector<16x16x4xf32> to vector<256x4xf32>
    %c0_27 = arith.constant 0 : index
    %c16 = arith.constant 16 : index
    %20 = vector.load %arg7[%c0_27, %c16] : memref<256x36xf32, #tpu.memory_space<vmem>>, vector<256x4xf32>
    tpu.vector_store %arg7[%c0_27, %c16], %19 {strides = array<i32>} : memref<256x36xf32, #tpu.memory_space<vmem>>, vector<256x4xf32>,
    %c1_28 = arith.constant 1 : index
    %c2_29 = arith.constant 2 : index
    %c0_30 = arith.constant 0 : index
    %21 = vector.load %arg6[%c1_28, %c2_29, %c0_30] : memref<18x18x4xf32, #tpu.memory_space<vmem>>, vector<16x16x4xf32>
    %22 = vector.shape_cast %21 : vector<16x16x4xf32> to vector<256x4xf32>
    %c0_31 = arith.constant 0 : index
    %c20 = arith.constant 20 : index
    %23 = vector.load %arg7[%c0_31, %c20] : memref<256x36xf32, #tpu.memory_space<vmem>>, vector<256x4xf32>
    tpu.vector_store %arg7[%c0_31, %c20], %22 {strides = array<i32>} : memref<256x36xf32, #tpu.memory_space<vmem>>, vector<256x4xf32>,
    %c2_32 = arith.constant 2 : index
    %c0_33 = arith.constant 0 : index
    %c0_34 = arith.constant 0 : index
    %24 = vector.load %arg6[%c2_32, %c0_33, %c0_34] : memref<18x18x4xf32, #tpu.memory_space<vmem>>, vector<16x16x4xf32>
    %25 = vector.shape_cast %24 : vector<16x16x4xf32> to vector<256x4xf32>
    %c0_35 = arith.constant 0 : index
    %c24 = arith.constant 24 : index
    %26 = vector.load %arg7[%c0_35, %c24] : memref<256x36xf32, #tpu.memory_space<vmem>>, vector<256x4xf32>
    tpu.vector_store %arg7[%c0_35, %c24], %25 {strides = array<i32>} : memref<256x36xf32, #tpu.memory_space<vmem>>, vector<256x4xf32>,
    %c2_36 = arith.constant 2 : index
    %c1_37 = arith.constant 1 : index
    %c0_38 = arith.constant 0 : index
    %27 = vector.load %arg6[%c2_36, %c1_37, %c0_38] : memref<18x18x4xf32, #tpu.memory_space<vmem>>, vector<16x16x4xf32>
    %28 = vector.shape_cast %27 : vector<16x16x4xf32> to vector<256x4xf32>
    %c0_39 = arith.constant 0 : index
    %c28 = arith.constant 28 : index
    %29 = vector.load %arg7[%c0_39, %c28] : memref<256x36xf32, #tpu.memory_space<vmem>>, vector<256x4xf32>
    tpu.vector_store %arg7[%c0_39, %c28], %28 {strides = array<i32>} : memref<256x36xf32, #tpu.memory_space<vmem>>, vector<256x4xf32>,
    %c2_40 = arith.constant 2 : index
    %c2_41 = arith.constant 2 : index
    %c0_42 = arith.constant 0 : index
    %30 = vector.load %arg6[%c2_40, %c2_41, %c0_42] : memref<18x18x4xf32, #tpu.memory_space<vmem>>, vector<16x16x4xf32>
    %31 = vector.shape_cast %30 : vector<16x16x4xf32> to vector<256x4xf32>
    %c0_43 = arith.constant 0 : index
    %c32 = arith.constant 32 : index
    %32 = vector.load %arg7[%c0_43, %c32] : memref<256x36xf32, #tpu.memory_space<vmem>>, vector<256x4xf32>
    tpu.vector_store %arg7[%c0_43, %c32], %31 {strides = array<i32>} : memref<256x36xf32, #tpu.memory_space<vmem>>, vector<256x4xf32>,
    %c0_44 = arith.constant 0 : index
    %c0_45 = arith.constant 0 : index
    %33 = vector.load %arg7[%c0_44, %c0_45] : memref<256x36xf32, #tpu.memory_space<vmem>>, vector<256x36xf32>
    %34 = arith.truncf %33 : vector<256x36xf32> to vector<256x36xbf16>
    %c0_46 = arith.constant 0 : index
    %c0_47 = arith.constant 0 : index
    %35 = vector.load %arg2[%c0_46, %c0_47] : memref<36x128xbf16, #tpu.memory_space<vmem>>, vector<36x128xbf16>
    %cst_48 = arith.constant dense<0.000000e+00> : vector<256x128xf32>
    %36 = tpu.matmul %34, %35, %cst_48 {dimension_numbers = #tpu.dot_dimension_numbers<[1], [0], [0], [1], [0, 0, 1, 1], [], []>} : vector<256x36xbf16>, vector<36x128xbf16>, vector<256x128xf32> -> vector<256x128xf32>
    %c0_49 = arith.constant 0 : index
    %c0_50 = arith.constant 0 : index
    %37 = vector.load %arg3[%c0_49, %c0_50] : memref<256x128xf32, #tpu.memory_space<vmem>>, vector<256x128xf32>
    tpu.vector_store %arg3[%c0_49, %c0_50], %36 {strides = array<i32>} : memref<256x128xf32, #tpu.memory_space<vmem>>, vector<256x128xf32>,
    %cst_51 = arith.constant dense<0.000000e+00> : vector<128xf32>
    %38 = vector.multi_reduction <add>, %36, %cst_51 [0] : vector<256x128xf32> to vector<128xf32>
    %39 = vector.shape_cast %38 : vector<128xf32> to vector<1x128xf32>
    %c0_52 = arith.constant 0 : index
    %c0_53 = arith.constant 0 : index
    %c0_54 = arith.constant 0 : index
    %40 = vector.load %arg4[%c0_52, %c0_53, %c0_54] : memref<1x1x128xf32, #tpu.memory_space<vmem>>, vector<1x1x128xf32>
    %41 = vector.shape_cast %40 : vector<1x1x128xf32> to vector<1x128xf32>
    %42 = vector.shape_cast %39 : vector<1x128xf32> to vector<1x1x128xf32>
    tpu.vector_store %arg4[%c0_52, %c0_53, %c0_54], %42 {strides = array<i32>} : memref<1x1x128xf32, #tpu.memory_space<vmem>>, vector<1x1x128xf32>,
    %43 = arith.mulf %36, %36 : vector<256x128xf32>
    %cst_55 = arith.constant dense<0.000000e+00> : vector<128xf32>
    %44 = vector.multi_reduction <add>, %43, %cst_55 [0] : vector<256x128xf32> to vector<128xf32>
    %45 = vector.shape_cast %44 : vector<128xf32> to vector<1x128xf32>
    %c0_56 = arith.constant 0 : index
    %c0_57 = arith.constant 0 : index
    %c0_58 = arith.constant 0 : index
    %46 = vector.load %arg5[%c0_56, %c0_57, %c0_58] : memref<1x1x128xf32, #tpu.memory_space<vmem>>, vector<1x1x128xf32>
    %47 = vector.shape_cast %46 : vector<1x1x128xf32> to vector<1x128xf32>
    %48 = vector.shape_cast %45 : vector<1x128xf32> to vector<1x1x128xf32>
    tpu.vector_store %arg5[%c0_56, %c0_57, %c0_58], %48 {strides = array<i32>} : memref<1x1x128xf32, #tpu.memory_space<vmem>>, vector<1x1x128xf32>,
    return
  }
  func.func @transform_0(%arg0: i32) -> (i32, i32, i32, i32) {
    %c0_i32 = arith.constant 0 : i32
    %c0_i32_0 = arith.constant 0 : i32
    %c0_i32_1 = arith.constant 0 : i32
    %c0_i32_2 = arith.constant 0 : i32
    return %arg0, %c0_i32, %c0_i32_0, %c0_i32_1 : i32, i32, i32, i32
  }
  func.func @transform_1(%arg0: i32) -> (i32, i32) {
    %c0_i32 = arith.constant 0 : i32
    %c0_i32_0 = arith.constant 0 : i32
    %c0_i32_1 = arith.constant 0 : i32
    return %c0_i32, %c0_i32_0 : i32, i32
  }
  func.func @transform_2(%arg0: i32) -> (i32, i32) {
    %c0_i32 = arith.constant 0 : i32
    %c0_i32_0 = arith.constant 0 : i32
    return %arg0, %c0_i32 : i32, i32
  }
  func.func @transform_3(%arg0: i32) -> (i32, i32, i32) {
    %c0_i32 = arith.constant 0 : i32
    %c0_i32_0 = arith.constant 0 : i32
    %c0_i32_1 = arith.constant 0 : i32
    return %arg0, %c0_i32, %c0_i32_0 : i32, i32, i32
  }
  func.func @transform_4(%arg0: i32) -> (i32, i32, i32) {
    %c0_i32 = arith.constant 0 : i32
    %c0_i32_0 = arith.constant 0 : i32
    %c0_i32_1 = arith.constant 0 : i32
    return %arg0, %c0_i32, %c0_i32_0 : i32, i32, i32
  }
}

module attributes {stable_mosaic.version = 11 : i64} {
  func.func @_bn_relu_kernel(%arg0: i32, %arg1: memref<512x128xf32, #tpu.memory_space<vmem>>, %arg2: memref<1x128xf32, #tpu.memory_space<vmem>>, %arg3: memref<1x128xf32, #tpu.memory_space<vmem>>, %arg4: memref<512x128xf32, #tpu.memory_space<vmem>>) attributes {dimension_semantics = [#tpu.dimension_semantics<parallel>], iteration_bounds = array<i64: 1>, scalar_prefetch = 0 : i64, scratch_operands = 0 : i64, tpu.core_type = #tpu.core_type<tc>, window_params = [{transform_indices = @transform_0, window_bounds = array<i64: 512, 128>}, {pipeline_mode = #tpu.pipeline_mode<synchronous>, transform_indices = @transform_1, window_bounds = array<i64: 1, 128>}, {pipeline_mode = #tpu.pipeline_mode<synchronous>, transform_indices = @transform_2, window_bounds = array<i64: 1, 128>}, {transform_indices = @transform_3, window_bounds = array<i64: 512, 128>}]} {
    %c0 = arith.constant 0 : index
    %c0_0 = arith.constant 0 : index
    %0 = vector.load %arg1[%c0, %c0_0] : memref<512x128xf32, #tpu.memory_space<vmem>>, vector<512x128xf32>
    %c0_1 = arith.constant 0 : index
    %c0_2 = arith.constant 0 : index
    %1 = vector.load %arg2[%c0_1, %c0_2] : memref<1x128xf32, #tpu.memory_space<vmem>>, vector<1x128xf32>
    %2 = vector.broadcast %1 : vector<1x128xf32> to vector<512x128xf32>
    %3 = arith.mulf %0, %2 : vector<512x128xf32>
    %c0_3 = arith.constant 0 : index
    %c0_4 = arith.constant 0 : index
    %4 = vector.load %arg3[%c0_3, %c0_4] : memref<1x128xf32, #tpu.memory_space<vmem>>, vector<1x128xf32>
    %5 = vector.broadcast %4 : vector<1x128xf32> to vector<512x128xf32>
    %6 = arith.addf %3, %5 : vector<512x128xf32>
    %cst = arith.constant 0.000000e+00 : f32
    %7 = vector.broadcast %cst : f32 to vector<512x128xf32>
    %8 = arith.maximumf %6, %7 : vector<512x128xf32>
    %c0_5 = arith.constant 0 : index
    %c0_6 = arith.constant 0 : index
    %9 = vector.load %arg4[%c0_5, %c0_6] : memref<512x128xf32, #tpu.memory_space<vmem>>, vector<512x128xf32>
    tpu.vector_store %arg4[%c0_5, %c0_6], %8 {strides = array<i32>} : memref<512x128xf32, #tpu.memory_space<vmem>>, vector<512x128xf32>,
    return
  }
  func.func @transform_0(%arg0: i32) -> (i32, i32) {
    %c0_i32 = arith.constant 0 : i32
    %c0_i32_0 = arith.constant 0 : i32
    return %arg0, %c0_i32 : i32, i32
  }
  func.func @transform_1(%arg0: i32) -> (i32, i32) {
    %c0_i32 = arith.constant 0 : i32
    %c0_i32_0 = arith.constant 0 : i32
    %c0_i32_1 = arith.constant 0 : i32
    return %c0_i32, %c0_i32_0 : i32, i32
  }
  func.func @transform_2(%arg0: i32) -> (i32, i32) {
    %c0_i32 = arith.constant 0 : i32
    %c0_i32_0 = arith.constant 0 : i32
    %c0_i32_1 = arith.constant 0 : i32
    return %c0_i32, %c0_i32_0 : i32, i32
  }
  func.func @transform_3(%arg0: i32) -> (i32, i32) {
    %c0_i32 = arith.constant 0 : i32
    %c0_i32_0 = arith.constant 0 : i32
    return %arg0, %c0_i32 : i32, i32
  }
}

</mosaic_0001>

<llo_original>
// kernel: conv_bn_relu.3
$region0: #{conv_bn_relu.3}
  #allocation0 [shape = 'u32[]', space=smem, size = 0x4, offset = 0x4, fixed_abs, tag = 'smem constant byte address 0x4 - core index']
  #allocation1 [shape = 'u32[144,128]{1,0:T(1,128)}', space=vmem, size = 0x12000, scoped, tag = 'internal scratch']
  %s0 = inlined_call_operand.vmem [shape: f32[512,128], index: 0, kind: input, shape index: {}, may-alias: {0,3}]
  %s1 = inlined_call_operand.vmem [shape: f32[1,128], index: 1, kind: input, shape index: {}]
  %s2 = inlined_call_operand.vmem [shape: f32[1,128], index: 2, kind: input, shape index: {}]
  %s3 = inlined_call_operand.vmem [shape: f32[512,128], index: 3, kind: output, shape index: {}, may-alias: {0,3}]
  %s4 = sld [smem:[#allocation0]]
  $region22: #{conv_bn_relu.3} parent=0
    _
  %s6 = ssub.s32 1, %s4
  %s7 = scalar_select 0, %s6, %s4
  // Predicated region
  $region2: #{conv_bn_relu.3} parent=0 // pred_check
    _
  $region3: #{conv_bn_relu.3} parent=0 // pred_check_branch
    %9 = sbr.rel (0) target = $region5
  $region4: #{conv_bn_relu.3} parent=0 // pred_region
    _
  $region5: #{conv_bn_relu.3} parent=0 // pred_fallthru
    _
  // Predicated region
  $region6: #{conv_bn_relu.3} parent=0 // pred_check
    _
  $region7: #{conv_bn_relu.3} parent=0 // pred_check_branch
    %11 = sbr.rel (0) target = $region9
  $region8: #{conv_bn_relu.3} parent=0 // pred_region
    _
  $region9: #{conv_bn_relu.3} parent=0 // pred_fallthru
    _
  // Predicated region
  $region10: #{conv_bn_relu.3} parent=0 // pred_check
    _
  $region11: #{conv_bn_relu.3} parent=0 // pred_check_branch
    %13 = sbr.rel (0) target = $region13
  $region12: #{conv_bn_relu.3} parent=0 // pred_region
    _
  $region13: #{conv_bn_relu.3} parent=0 // pred_fallthru
    _
  %v14 = vld [vmem:[%s0] sm:$0xff]
  %v15 = vld [vmem:[%s0 + $0x8] sm:$0xff]
  %v16 = vld [vmem:[%s0 + $0x10] sm:$0xff]
  %v17 = vld [vmem:[%s0 + $0x18] sm:$0xff]
  %v18 = vld [vmem:[%s0 + $0x20] sm:$0xff]
  %v19 = vld [vmem:[%s0 + $0x28] sm:$0xff]
  %v20 = vld [vmem:[%s0 + $0x30] sm:$0xff]
  %v21 = vld [vmem:[%s0 + $0x38] sm:$0xff]
  %v22 = vld [vmem:[%s0 + $0x40] sm:$0xff]
  %v23 = vld [vmem:[%s0 + $0x48] sm:$0xff]
  %v24 = vld [vmem:[%s0 + $0x50] sm:$0xff]
  %v25 = vld [vmem:[%s0 + $0x58] sm:$0xff]
  %v26 = vld [vmem:[%s0 + $0x60] sm:$0xff]
  %v27 = vld [vmem:[%s0 + $0x68] sm:$0xff]
  %v28 = vld [vmem:[%s0 + $0x70] sm:$0xff]
  %v29 = vld [vmem:[%s0 + $0x78] sm:$0xff]
  %v30 = vld [vmem:[%s0 + $0x80] sm:$0xff]
  %v31 = vld [vmem:[%s0 + $0x88] sm:$0xff]
  %v32 = vld [vmem:[%s0 + $0x90] sm:$0xff]
  %v33 = vld [vmem:[%s0 + $0x98] sm:$0xff]
  %v34 = vld [vmem:[%s0 + $0xa0] sm:$0xff]
  %v35 = vld [vmem:[%s0 + $0xa8] sm:$0xff]
  %v36 = vld [vmem:[%s0 + $0xb0] sm:$0xff]
  %v37 = vld [vmem:[%s0 + $0xb8] sm:$0xff]
  %v38 = vld [vmem:[%s0 + $0xc0] sm:$0xff]
  %v39 = vld [vmem:[%s0 + $0xc8] sm:$0xff]
  %v40 = vld [vmem:[%s0 + $0xd0] sm:$0xff]
  %v41 = vld [vmem:[%s0 + $0xd8] sm:$0xff]
  %v42 = vld [vmem:[%s0 + $0xe0] sm:$0xff]
  %v43 = vld [vmem:[%s0 + $0xe8] sm:$0xff]
  %v44 = vld [vmem:[%s0 + $0xf0] sm:$0xff]
  %v45 = vld [vmem:[%s0 + $0xf8] sm:$0xff]
  %v46 = vld [vmem:[%s0 + $0x100] sm:$0xff]
  %v47 = vld [vmem:[%s0 + $0x108] sm:$0xff]
  %v48 = vld [vmem:[%s0 + $0x110] sm:$0xff]
  %v49 = vld [vmem:[%s0 + $0x118] sm:$0xff]
  %v50 = vld [vmem:[%s0 + $0x120] sm:$0xff]
  %v51 = vld [vmem:[%s0 + $0x128] sm:$0xff]
  %v52 = vld [vmem:[%s0 + $0x130] sm:$0xff]
  %v53 = vld [vmem:[%s0 + $0x138] sm:$0xff]
  %v54 = vld [vmem:[%s0 + $0x140] sm:$0xff]
  %v55 = vld [vmem:[%s0 + $0x148] sm:$0xff]
  %v56 = vld [vmem:[%s0 + $0x150] sm:$0xff]
  %v57 = vld [vmem:[%s0 + $0x158] sm:$0xff]
  %v58 = vld [vmem:[%s0 + $0x160] sm:$0xff]
  %v59 = vld [vmem:[%s0 + $0x168] sm:$0xff]
  %v60 = vld [vmem:[%s0 + $0x170] sm:$0xff]
  %v61 = vld [vmem:[%s0 + $0x178] sm:$0xff]
  %v62 = vld [vmem:[%s0 + $0x180] sm:$0xff]
  %v63 = vld [vmem:[%s0 + $0x188] sm:$0xff]
  %v64 = vld [vmem:[%s0 + $0x190] sm:$0xff]
  %v65 = vld [vmem:[%s0 + $0x198] sm:$0xff]
  %v66 = vld [vmem:[%s0 + $0x1a0] sm:$0xff]
  %v67 = vld [vmem:[%s0 + $0x1a8] sm:$0xff]
  %v68 = vld [vmem:[%s0 + $0x1b0] sm:$0xff]
  %v69 = vld [vmem:[%s0 + $0x1b8] sm:$0xff]
  %v70 = vld [vmem:[%s0 + $0x1c0] sm:$0xff]
  %v71 = vld [vmem:[%s0 + $0x1c8] sm:$0xff]
  %v72 = vld [vmem:[%s0 + $0x1d0] sm:$0xff]
  %v73 = vld [vmem:[%s0 + $0x1d8] sm:$0xff]
  %v74 = vld [vmem:[%s0 + $0x1e0] sm:$0xff]
  %v75 = vld [vmem:[%s0 + $0x1e8] sm:$0xff]
  %v76 = vld [vmem:[%s0 + $0x1f0] sm:$0xff]
  %v77 = vld [vmem:[%s0 + $0x1f8] sm:$0xff]
  %v78 = vld [vmem:[%s1] sm:$0x1]
  %v80 = vlaneseq
  %v81 = vshrl.u32 %v80, 7
  %v82 = vsub.s32 0, %v81
  %v83 = vrot.slane %v78, %v82
  %v85 = vmul.f32 %v14, %v83
  %v86 = vmul.f32 %v15, %v83
  %v87 = vmul.f32 %v16, %v83
  %v88 = vmul.f32 %v17, %v83
  %v89 = vmul.f32 %v18, %v83
  %v90 = vmul.f32 %v19, %v83
  %v91 = vmul.f32 %v20, %v83
  %v92 = vmul.f32 %v21, %v83
  %v93 = vmul.f32 %v22, %v83
  %v94 = vmul.f32 %v23, %v83
  %v95 = vmul.f32 %v24, %v83
  %v96 = vmul.f32 %v25, %v83
  %v97 = vmul.f32 %v26, %v83
  %v98 = vmul.f32 %v27, %v83
  %v99 = vmul.f32 %v28, %v83
  %v100 = vmul.f32 %v29, %v83
  %v101 = vmul.f32 %v30, %v83
  %v102 = vmul.f32 %v31, %v83
  %v103 = vmul.f32 %v32, %v83
  %v104 = vmul.f32 %v33, %v83
  %v105 = vmul.f32 %v34, %v83
  %v106 = vmul.f32 %v35, %v83
  %v107 = vmul.f32 %v36, %v83
  %v108 = vmul.f32 %v37, %v83
  %v109 = vmul.f32 %v38, %v83
  %v110 = vmul.f32 %v39, %v83
  %v111 = vmul.f32 %v40, %v83
  %v112 = vmul.f32 %v41, %v83
  %v113 = vmul.f32 %v42, %v83
  %v114 = vmul.f32 %v43, %v83
  %v115 = vmul.f32 %v44, %v83
  %v116 = vmul.f32 %v45, %v83
  %v117 = vmul.f32 %v46, %v83
  %v118 = vmul.f32 %v47, %v83
  %v119 = vmul.f32 %v48, %v83
  %v120 = vmul.f32 %v49, %v83
  %v121 = vmul.f32 %v50, %v83
  %v122 = vmul.f32 %v51, %v83
  %v123 = vmul.f32 %v52, %v83
  %v124 = vmul.f32 %v53, %v83
  %v125 = vmul.f32 %v54, %v83
  %v126 = vmul.f32 %v55, %v83
  %v127 = vmul.f32 %v56, %v83
  %v128 = vmul.f32 %v57, %v83
  %v129 = vmul.f32 %v58, %v83
  %v130 = vmul.f32 %v59, %v83
  %v131 = vmul.f32 %v60, %v83
  %v132 = vmul.f32 %v61, %v83
  %v133 = vmul.f32 %v62, %v83
  %v134 = vmul.f32 %v63, %v83
  %v135 = vmul.f32 %v64, %v83
  %v136 = vmul.f32 %v65, %v83
  %v137 = vmul.f32 %v66, %v83
  %v138 = vmul.f32 %v67, %v83
  %v139 = vmul.f32 %v68, %v83
  %v140 = vmul.f32 %v69, %v83
  %v141 = vmul.f32 %v70, %v83
  %v142 = vmul.f32 %v71, %v83
  %v143 = vmul.f32 %v72, %v83
  %v144 = vmul.f32 %v73, %v83
  %v145 = vmul.f32 %v74, %v83
  %v146 = vmul.f32 %v75, %v83
  %v147 = vmul.f32 %v76, %v83
  %v148 = vmul.f32 %v77, %v83
  %v149 = vld [vmem:[%s2] sm:$0x1]
  %v151 = vlaneseq
  %v152 = vshrl.u32 %v151, 7
  %v153 = vsub.s32 0, %v152
  %v154 = vrot.slane %v149, %v153
  %v156 = vadd.f32 %v85, %v154
  %v157 = vadd.f32 %v86, %v154
  %v158 = vadd.f32 %v87, %v154
  %v159 = vadd.f32 %v88, %v154
  %v160 = vadd.f32 %v89, %v154
  %v161 = vadd.f32 %v90, %v154
  %v162 = vadd.f32 %v91, %v154
  %v163 = vadd.f32 %v92, %v154
  %v164 = vadd.f32 %v93, %v154
  %v165 = vadd.f32 %v94, %v154
  %v166 = vadd.f32 %v95, %v154
  %v167 = vadd.f32 %v96, %v154
  %v168 = vadd.f32 %v97, %v154
  %v169 = vadd.f32 %v98, %v154
  %v170 = vadd.f32 %v99, %v154
  %v171 = vadd.f32 %v100, %v154
  %v172 = vadd.f32 %v101, %v154
  %v173 = vadd.f32 %v102, %v154
  %v174 = vadd.f32 %v103, %v154
  %v175 = vadd.f32 %v104, %v154
  %v176 = vadd.f32 %v105, %v154
  %v177 = vadd.f32 %v106, %v154
  %v178 = vadd.f32 %v107, %v154
  %v179 = vadd.f32 %v108, %v154
  %v180 = vadd.f32 %v109, %v154
  %v181 = vadd.f32 %v110, %v154
  %v182 = vadd.f32 %v111, %v154
  %v183 = vadd.f32 %v112, %v154
  %v184 = vadd.f32 %v113, %v154
  %v185 = vadd.f32 %v114, %v154
  %v186 = vadd.f32 %v115, %v154
  %v187 = vadd.f32 %v116, %v154
  %v188 = vadd.f32 %v117, %v154
  %v189 = vadd.f32 %v118, %v154
  %v190 = vadd.f32 %v119, %v154
  %v191 = vadd.f32 %v120, %v154
  %v192 = vadd.f32 %v121, %v154
  %v193 = vadd.f32 %v122, %v154
  %v194 = vadd.f32 %v123, %v154
  %v195 = vadd.f32 %v124, %v154
  %v196 = vadd.f32 %v125, %v154
  %v197 = vadd.f32 %v126, %v154
  %v198 = vadd.f32 %v127, %v154
  %v199 = vadd.f32 %v128, %v154
  %v200 = vadd.f32 %v129, %v154
  %v201 = vadd.f32 %v130, %v154
  %v202 = vadd.f32 %v131, %v154
  %v203 = vadd.f32 %v132, %v154
  %v204 = vadd.f32 %v133, %v154
  %v205 = vadd.f32 %v134, %v154
  %v206 = vadd.f32 %v135, %v154
  %v207 = vadd.f32 %v136, %v154
  %v208 = vadd.f32 %v137, %v154
  %v209 = vadd.f32 %v138, %v154
  %v210 = vadd.f32 %v139, %v154
  %v211 = vadd.f32 %v140, %v154
  %v212 = vadd.f32 %v141, %v154
  %v213 = vadd.f32 %v142, %v154
  %v214 = vadd.f32 %v143, %v154
  %v215 = vadd.f32 %v144, %v154
  %v216 = vadd.f32 %v145, %v154
  %v217 = vadd.f32 %v146, %v154
  %v218 = vadd.f32 %v147, %v154
  %v219 = vadd.f32 %v148, %v154
  %v220 = vmax.f32 %v156, 0.0
  %v221 = vmax.f32 %v157, 0.0
  %v222 = vmax.f32 %v158, 0.0
  %v223 = vmax.f32 %v159, 0.0
  %v224 = vmax.f32 %v160, 0.0
  %v225 = vmax.f32 %v161, 0.0
  %v226 = vmax.f32 %v162, 0.0
  %v227 = vmax.f32 %v163, 0.0
  %v228 = vmax.f32 %v164, 0.0
  %v229 = vmax.f32 %v165, 0.0
  %v230 = vmax.f32 %v166, 0.0
  %v231 = vmax.f32 %v167, 0.0
  %v232 = vmax.f32 %v168, 0.0
  %v233 = vmax.f32 %v169, 0.0
  %v234 = vmax.f32 %v170, 0.0
  %v235 = vmax.f32 %v171, 0.0
  %v236 = vmax.f32 %v172, 0.0
  %v237 = vmax.f32 %v173, 0.0
  %v238 = vmax.f32 %v174, 0.0
  %v239 = vmax.f32 %v175, 0.0
  %v240 = vmax.f32 %v176, 0.0
  %v241 = vmax.f32 %v177, 0.0
  %v242 = vmax.f32 %v178, 0.0
  %v243 = vmax.f32 %v179, 0.0
  %v244 = vmax.f32 %v180, 0.0
  %v245 = vmax.f32 %v181, 0.0
  %v246 = vmax.f32 %v182, 0.0
  %v247 = vmax.f32 %v183, 0.0
  %v248 = vmax.f32 %v184, 0.0
  %v249 = vmax.f32 %v185, 0.0
  %v250 = vmax.f32 %v186, 0.0
  %v251 = vmax.f32 %v187, 0.0
  %v252 = vmax.f32 %v188, 0.0
  %v253 = vmax.f32 %v189, 0.0
  %v254 = vmax.f32 %v190, 0.0
  %v255 = vmax.f32 %v191, 0.0
  %v256 = vmax.f32 %v192, 0.0
  %v257 = vmax.f32 %v193, 0.0
  %v258 = vmax.f32 %v194, 0.0
  %v259 = vmax.f32 %v195, 0.0
  %v260 = vmax.f32 %v196, 0.0
  %v261 = vmax.f32 %v197, 0.0
  %v262 = vmax.f32 %v198, 0.0
  %v263 = vmax.f32 %v199, 0.0
  %v264 = vmax.f32 %v200, 0.0
  %v265 = vmax.f32 %v201, 0.0
  %v266 = vmax.f32 %v202, 0.0
  %v267 = vmax.f32 %v203, 0.0
  %v268 = vmax.f32 %v204, 0.0
  %v269 = vmax.f32 %v205, 0.0
  %v270 = vmax.f32 %v206, 0.0
  %v271 = vmax.f32 %v207, 0.0
  %v272 = vmax.f32 %v208, 0.0
  %v273 = vmax.f32 %v209, 0.0
  %v274 = vmax.f32 %v210, 0.0
  %v275 = vmax.f32 %v211, 0.0
  %v276 = vmax.f32 %v212, 0.0
  %v277 = vmax.f32 %v213, 0.0
  %v278 = vmax.f32 %v214, 0.0
  %v279 = vmax.f32 %v215, 0.0
  %v280 = vmax.f32 %v216, 0.0
  %v281 = vmax.f32 %v217, 0.0
  %v282 = vmax.f32 %v218, 0.0
  %v283 = vmax.f32 %v219, 0.0
  %284 = vst [vmem:[%s3] sm:$0xff] %v220
  %285 = vst [vmem:[%s3 + $0x8] sm:$0xff] %v221
  %286 = vst [vmem:[%s3 + $0x10] sm:$0xff] %v222
  %287 = vst [vmem:[%s3 + $0x18] sm:$0xff] %v223
  %288 = vst [vmem:[%s3 + $0x20] sm:$0xff] %v224
  %289 = vst [vmem:[%s3 + $0x28] sm:$0xff] %v225
  %290 = vst [vmem:[%s3 + $0x30] sm:$0xff] %v226
  %291 = vst [vmem:[%s3 + $0x38] sm:$0xff] %v227
  %292 = vst [vmem:[%s3 + $0x40] sm:$0xff] %v228
  %293 = vst [vmem:[%s3 + $0x48] sm:$0xff] %v229
  %294 = vst [vmem:[%s3 + $0x50] sm:$0xff] %v230
  %295 = vst [vmem:[%s3 + $0x58] sm:$0xff] %v231
  %296 = vst [vmem:[%s3 + $0x60] sm:$0xff] %v232
  %297 = vst [vmem:[%s3 + $0x68] sm:$0xff] %v233
  %298 = vst [vmem:[%s3 + $0x70] sm:$0xff] %v234
  %299 = vst [vmem:[%s3 + $0x78] sm:$0xff] %v235
  %300 = vst [vmem:[%s3 + $0x80] sm:$0xff] %v236
  %301 = vst [vmem:[%s3 + $0x88] sm:$0xff] %v237
  %302 = vst [vmem:[%s3 + $0x90] sm:$0xff] %v238
  %303 = vst [vmem:[%s3 + $0x98] sm:$0xff] %v239
  %304 = vst [vmem:[%s3 + $0xa0] sm:$0xff] %v240
  %305 = vst [vmem:[%s3 + $0xa8] sm:$0xff] %v241
  %306 = vst [vmem:[%s3 + $0xb0] sm:$0xff] %v242
  %307 = vst [vmem:[%s3 + $0xb8] sm:$0xff] %v243
  %308 = vst [vmem:[%s3 + $0xc0] sm:$0xff] %v244
  %309 = vst [vmem:[%s3 + $0xc8] sm:$0xff] %v245
  %310 = vst [vmem:[%s3 + $0xd0] sm:$0xff] %v246
  %311 = vst [vmem:[%s3 + $0xd8] sm:$0xff] %v247
  %312 = vst [vmem:[%s3 + $0xe0] sm:$0xff] %v248
  %313 = vst [vmem:[%s3 + $0xe8] sm:$0xff] %v249
  %314 = vst [vmem:[%s3 + $0xf0] sm:$0xff] %v250
  %315 = vst [vmem:[%s3 + $0xf8] sm:$0xff] %v251
  %316 = vst [vmem:[%s3 + $0x100] sm:$0xff] %v252
  %317 = vst [vmem:[%s3 + $0x108] sm:$0xff] %v253
  %318 = vst [vmem:[%s3 + $0x110] sm:$0xff] %v254
  %319 = vst [vmem:[%s3 + $0x118] sm:$0xff] %v255
  %320 = vst [vmem:[%s3 + $0x120] sm:$0xff] %v256
  %321 = vst [vmem:[%s3 + $0x128] sm:$0xff] %v257
  %322 = vst [vmem:[%s3 + $0x130] sm:$0xff] %v258
  %323 = vst [vmem:[%s3 + $0x138] sm:$0xff] %v259
  %324 = vst [vmem:[%s3 + $0x140] sm:$0xff] %v260
  %325 = vst [vmem:[%s3 + $0x148] sm:$0xff] %v261
  %326 = vst [vmem:[%s3 + $0x150] sm:$0xff] %v262
  %327 = vst [vmem:[%s3 + $0x158] sm:$0xff] %v263
  %328 = vst [vmem:[%s3 + $0x160] sm:$0xff] %v264
  %329 = vst [vmem:[%s3 + $0x168] sm:$0xff] %v265
  %330 = vst [vmem:[%s3 + $0x170] sm:$0xff] %v266
  %331 = vst [vmem:[%s3 + $0x178] sm:$0xff] %v267
  %332 = vst [vmem:[%s3 + $0x180] sm:$0xff] %v268
  %333 = vst [vmem:[%s3 + $0x188] sm:$0xff] %v269
  %334 = vst [vmem:[%s3 + $0x190] sm:$0xff] %v270
  %335 = vst [vmem:[%s3 + $0x198] sm:$0xff] %v271
  %336 = vst [vmem:[%s3 + $0x1a0] sm:$0xff] %v272
  %337 = vst [vmem:[%s3 + $0x1a8] sm:$0xff] %v273
  %338 = vst [vmem:[%s3 + $0x1b0] sm:$0xff] %v274
  %339 = vst [vmem:[%s3 + $0x1b8] sm:$0xff] %v275
  %340 = vst [vmem:[%s3 + $0x1c0] sm:$0xff] %v276
  %341 = vst [vmem:[%s3 + $0x1c8] sm:$0xff] %v277
  %342 = vst [vmem:[%s3 + $0x1d0] sm:$0xff] %v278
  %343 = vst [vmem:[%s3 + $0x1d8] sm:$0xff] %v279
  %344 = vst [vmem:[%s3 + $0x1e0] sm:$0xff] %v280
  %345 = vst [vmem:[%s3 + $0x1e8] sm:$0xff] %v281
  %346 = vst [vmem:[%s3 + $0x1f0] sm:$0xff] %v282
  %347 = vst [vmem:[%s3 + $0x1f8] sm:$0xff] %v283
  // Predicated region
  $region14: #{conv_bn_relu.3} parent=0 // pred_check
    _
  $region15: #{conv_bn_relu.3} parent=0 // pred_check_branch
    %349 = sbr.rel (0) target = $region17
  $region16: #{conv_bn_relu.3} parent=0 // pred_region
    _
  $region17: #{conv_bn_relu.3} parent=0 // pred_fallthru
    _
  // Predicated region
  $region18: #{conv_bn_relu.3} parent=0 // pred_check
    _
  $region19: #{conv_bn_relu.3} parent=0 // pred_check_branch
    %351 = sbr.rel (0) target = $region21
  $region20: #{conv_bn_relu.3} parent=0 // pred_region
    _
  $region21: #{conv_bn_relu.3} parent=0 // pred_fallthru
    _

// kernel: conv_bn_relu.2
$region0: #{conv_bn_relu.2}
  #allocation0 [shape = 'u32[]', space=smem, size = 0x4, offset = 0x4, fixed_abs, tag = 'smem constant byte address 0x4 - core index']
  #allocation1 [shape = 'u32[144,128]{1,0:T(1,128)}', space=vmem, size = 0x12000, scoped, tag = 'internal scratch']
  #allocation2 [shape = 'f32[18,18,4]{2,1,0:T(8,128)}', space=vmem, size = 0x36000, scoped, tag = 'scratch operand']
  #allocation3 [shape = 'f32[256,36]{1,0:T(8,128)}', space=vmem, size = 0x20000, scoped, tag = 'scratch operand']
  %s0 = inlined_call_operand.vmem [shape: bf16[2,16,16,4], index: 0, kind: input, shape index: {}]
  %s1 = inlined_call_operand.vmem [shape: bf16[36,128], index: 1, kind: input, shape index: {}]
  %s2 = inlined_call_operand.vmem [shape: f32[512,128], index: 2, kind: output, shape index: {0}]
  %s3 = inlined_call_operand.vmem [shape: f32[2,1,128], index: 3, kind: output, shape index: {1}]
  %s4 = inlined_call_operand.vmem [shape: f32[2,1,128], index: 4, kind: output, shape index: {2}]
  %5 = xla_tuple %s2, %s3, %s4
  %s6 = sld [smem:[#allocation0]]
  $region57: #{conv_bn_relu.2} parent=0
    _
  %s8 = ssub.s32 1, %s6
  %s9 = scalar_select 0, %s8, %s6
  loop: start=0, step=1, limit=4
  $region2: #{conv_bn_relu.2} parent=0 // loop_pre_header
    _
  $region3: #{conv_bn_relu.2} parent=0 // loop_header
    %s11 = sphi 0, %s15
    %p12 = scmp.ge.s32.totalorder %s11, 4
    %s21 = sphi 0, %s23
    %s24 = sphi 0, %s21
    %s25 = sphi 0, %s24
    %s41 = sphi 0, %s25
    %s45 = sphi 0, %s45
    %s47 = sphi 0, %s45
    %s48 = sphi 0, %s47
    %s62 = sphi 0, %s48
    %s68 = sphi 0, %s70
    %s71 = sphi 0, %s68
    %s72 = sphi 0, %s71
    %s88 = sphi 0, %s72
    %s94 = sphi 0, %s96
    %s97 = sphi 0, %s94
    %s98 = sphi 0, %s97
    %s114 = sphi 0, %s98
    %s120 = sphi 0, %s122
    %s123 = sphi 0, %s120
    %s124 = sphi 0, %s123
    %s140 = sphi 0, %s124
  $region4: #{conv_bn_relu.2} parent=0 // loop_header_branch
    %14 = sbr.rel (%p12) target = $region8
  $region5: #{conv_bn_relu.2} parent=0 // loop_body
    %s16 = ssub.s32 %s11, 1
    %s17 = ssub.s32 %s11, 2
    %s18 = sadd.s32 %s11, 1
    %s19 = ssub.s32 %s11, %s18
    %p20 = scmp.eq.s32.totalorder %s19, 0
    %s22 = sadd.s32 %s21, 1
    %s23 = scalar_select %p20, %s21, %s22
    %p26 = pneg %p20
    %p27 = scmp.eq.s32.totalorder %s11, 1
    %p28 = por %p26, %p27
    %p29 = scmp.ne.s32.totalorder %s21, %s24
    %p30 = scmp.eq.s32.totalorder %s11, 0
    %p31 = por %p29, %p30
    %p32 = scmp.ne.s32.totalorder %s21, %s24
    %p33 = scmp.eq.s32.totalorder %s16, 1
    %p34 = por %p32, %p33
    %p35 = scmp.ne.s32.totalorder %s24, %s25
    %p36 = scmp.eq.s32.totalorder %s16, 0
    %p37 = por %p35, %p36
    %p38 = scmp.ne.s32.totalorder %s24, %s25
    %p39 = scmp.eq.s32.totalorder %s17, 1
    %p40 = por %p38, %p39
    %p42 = scmp.ne.s32.totalorder %s25, %s41
    %p43 = scmp.eq.s32.totalorder %s17, 0
    %p44 = por %p42, %p43
    %s46 = sadd.s32 %s45, 1
    %p49 = scmp.eq.s32.totalorder %s11, 1
    %p50 = scmp.ne.s32.totalorder %s45, %s47
    %p51 = scmp.eq.s32.totalorder %s11, 0
    %p52 = por %p50, %p51
    %p53 = scmp.ne.s32.totalorder %s45, %s47
    %p54 = scmp.eq.s32.totalorder %s16, 1
    %p55 = por %p53, %p54
    %p56 = scmp.ne.s32.totalorder %s47, %s48
    %p57 = scmp.eq.s32.totalorder %s16, 0
    %p58 = por %p56, %p57
    %p59 = scmp.ne.s32.totalorder %s47, %s48
    %p60 = scmp.eq.s32.totalorder %s17, 1
    %p61 = por %p59, %p60
    %p63 = scmp.ne.s32.totalorder %s48, %s62
    %p64 = scmp.eq.s32.totalorder %s17, 0
    %p65 = por %p63, %p64
    %s66 = ssub.s32 %s11, %s18
    %p67 = scmp.eq.s32.totalorder %s66, 0
    %s69 = sadd.s32 %s68, 1
    %s70 = scalar_select %p67, %s68, %s69
    %p73 = pneg %p67
    %p74 = scmp.eq.s32.totalorder %s11, 1
    %p75 = por %p73, %p74
    %p76 = scmp.ne.s32.totalorder %s68, %s71
    %p77 = scmp.eq.s32.totalorder %s11, 0
    %p78 = por %p76, %p77
    %p79 = scmp.ne.s32.totalorder %s68, %s71
    %p80 = scmp.eq.s32.totalorder %s16, 1
    %p81 = por %p79, %p80
    %p82 = scmp.ne.s32.totalorder %s71, %s72
    %p83 = scmp.eq.s32.totalorder %s16, 0
    %p84 = por %p82, %p83
    %p85 = scmp.ne.s32.totalorder %s71, %s72
    %p86 = scmp.eq.s32.totalorder %s17, 1
    %p87 = por %p85, %p86
    %p89 = scmp.ne.s32.totalorder %s72, %s88
    %p90 = scmp.eq.s32.totalorder %s17, 0
    %p91 = por %p89, %p90
    %s92 = ssub.s32 %s11, %s18
    %p93 = scmp.eq.s32.totalorder %s92, 0
    %s95 = sadd.s32 %s94, 1
    %s96 = scalar_select %p93, %s94, %s95
    %p99 = pneg %p93
    %p100 = scmp.eq.s32.totalorder %s11, 1
    %p101 = por %p99, %p100
    %p102 = scmp.ne.s32.totalorder %s94, %s97
    %p103 = scmp.eq.s32.totalorder %s11, 0
    %p104 = por %p102, %p103
    %p105 = scmp.ne.s32.totalorder %s94, %s97
    %p106 = scmp.eq.s32.totalorder %s16, 1
    %p107 = por %p105, %p106
    %p108 = scmp.ne.s32.totalorder %s97, %s98
    %p109 = scmp.eq.s32.totalorder %s16, 0
    %p110 = por %p108, %p109
    %p111 = scmp.ne.s32.totalorder %s97, %s98
    %p112 = scmp.eq.s32.totalorder %s17, 1
    %p113 = por %p111, %p112
    %p115 = scmp.ne.s32.totalorder %s98, %s114
    %p116 = scmp.eq.s32.totalorder %s17, 0
    %p117 = por %p115, %p116
    %s118 = ssub.s32 %s11, %s18
    %p119 = scmp.eq.s32.totalorder %s118, 0
    %s121 = sadd.s32 %s120, 1
    %s122 = scalar_select %p119, %s120, %s121
    %p125 = pneg %p119
    %p126 = scmp.eq.s32.totalorder %s11, 1
    %p127 = por %p125, %p126
    %p128 = scmp.ne.s32.totalorder %s120, %s123
    %p129 = scmp.eq.s32.totalorder %s11, 0
    %p130 = por %p128, %p129
    %p131 = scmp.ne.s32.totalorder %s120, %s123
    %p132 = scmp.eq.s32.totalorder %s16, 1
    %p133 = por %p131, %p132
    %p134 = scmp.ne.s32.totalorder %s123, %s124
    %p135 = scmp.eq.s32.totalorder %s16, 0
    %p136 = por %p134, %p135
    %p137 = scmp.ne.s32.totalorder %s123, %s124
    %p138 = scmp.eq.s32.totalorder %s17, 1
    %p139 = por %p137, %p138
    %p141 = scmp.ne.s32.totalorder %s124, %s140
    %p142 = scmp.eq.s32.totalorder %s17, 0
    %p143 = por %p141, %p142
    %p144 = scmp.le.s32.totalorder 1, %s11
    %p145 = scmp.lt.s32.totalorder %s11, 3
    %p146 = pnand %p144, %p145
    %p147 = pneg %p146
    // Predicated region
    $region9: #{conv_bn_relu.2} parent=5 // pred_check
      _
    $region10: #{conv_bn_relu.2} parent=5 // pred_check_branch
      %149 = sbr.rel (%p146) target = $region12
    $region11: #{conv_bn_relu.2} parent=5 // pred_region
      %s150 = ssub.s32 %s11, 1
      // Predicated region
      $region13: #{conv_bn_relu.2} parent=11 // pred_check
        %p151 = pneg %p58
      $region14: #{conv_bn_relu.2} parent=11 // pred_check_branch
        %153 = sbr.rel (%p151) target = $region16
      $region15: #{conv_bn_relu.2} parent=11 // pred_region
        _
      $region16: #{conv_bn_relu.2} parent=11 // pred_fallthru
        _
    $region12: #{conv_bn_relu.2} parent=5 // pred_fallthru
      _
    %p154 = scmp.lt.s32.totalorder %s11, 2
    // Predicated region
    $region17: #{conv_bn_relu.2} parent=5 // pred_check
      %p155 = pneg %p154
    $region18: #{conv_bn_relu.2} parent=5 // pred_check_branch
      %157 = sbr.rel (%p155) target = $region20
    $region19: #{conv_bn_relu.2} parent=5 // pred_region
      // Predicated region
      $region21: #{conv_bn_relu.2} parent=19 // pred_check
        %p158 = pneg %p31
      $region22: #{conv_bn_relu.2} parent=19 // pred_check_branch
        %160 = sbr.rel (%p158) target = $region24
      $region23: #{conv_bn_relu.2} parent=19 // pred_region
        %p161 = scmp.lt.s32.totalorder %s11, 1
        %s162 = scalar_select %p161, %s11, 1
        %s163 = smul.addr %s162, 32
        %s164 = smul.addr %s163, 4
        %s165 = scalar_lea.vmem %s0, %s164
      $region24: #{conv_bn_relu.2} parent=19 // pred_fallthru
        _
    $region20: #{conv_bn_relu.2} parent=5 // pred_fallthru
      _
    %p166 = scmp.le.s32.totalorder 1, %s11
    %p167 = scmp.lt.s32.totalorder %s11, 3
    %p168 = pnand %p166, %p167
    %p169 = pneg %p168
    // Predicated region
    $region25: #{conv_bn_relu.2} parent=5 // pred_check
      _
    $region26: #{conv_bn_relu.2} parent=5 // pred_check_branch
      %171 = sbr.rel (%p168) target = $region28
    $region27: #{conv_bn_relu.2} parent=5 // pred_region
      %s172 = ssub.s32 %s11, 1
      %p173 = scmp.lt.s32.totalorder %s16, 1
      %s174 = scalar_select %p173, %s16, 1
      %s175 = smul.addr %s174, 32
      %s176 = smul.addr %s175, 4
      %s177 = scalar_lea.vmem %s0, %s176
      %p178 = pneg %p37
      %p179 = pneg %p34
      %p180 = pneg %p58
      %p181 = pneg %p55
      %p182 = pneg %p84
      %p183 = pneg %p81
      %s184 = smul.u32 32, %s16
      %p185 = scmp.lt.s32.totalorder %s184, 63
      %s186 = scalar_select %p185, %s184, 63
      %s187 = smul.addr %s186, 8
      %s188 = scalar_lea.vmem %s2, %s187
      %p189 = pneg %p110
      %p190 = pneg %p107
      %p191 = scmp.lt.s32.totalorder %s16, 1
      %s192 = scalar_select %p191, %s16, 1
      %s193 = scalar_lea.vmem %s3, %s192
      %p194 = pneg %p136
      %p195 = pneg %p133
      %p196 = scmp.lt.s32.totalorder %s16, 1
      %s197 = scalar_select %p196, %s16, 1
      %s198 = scalar_lea.vmem %s4, %s197
      %p199 = scmp.lt.s32.totalorder %s16, 1
      %s200 = scalar_select %p199, %s16, 1
      %s201 = smul.addr %s200, 32
      %s202 = smul.addr %s201, 4
      %s203 = scalar_lea.vmem %s0, %s202
      %s204 = smul.u32 32, %s16
      %p205 = scmp.lt.s32.totalorder %s204, 63
      %s206 = scalar_select %p205, %s204, 63
      %s207 = smul.addr %s206, 8
      %s208 = scalar_lea.vmem %s2, %s207
      %s209 = smul.u32 32, %s16
      %p210 = scmp.lt.s32.totalorder %s16, 1
      %s211 = scalar_select %p210, %s16, 1
      %s212 = scalar_lea.vmem %s3, %s211
      %p213 = scmp.lt.s32.totalorder %s16, 1
      %s214 = scalar_select %p213, %s16, 1
      %s215 = scalar_lea.vmem %s4, %s214
      %vm217 = vcmask 31744
      %218 = vst.msk [vmem:[#allocation2] sm:$0xff] %vm217, 0.0
      %219 = vst.msk [vmem:[#allocation2 + $0x8] sm:$0xff] %vm217, 0.0
      %vm220 = vcmask 25600
      %221 = vst.msk [vmem:[#allocation2 + $0x10] sm:$0x3] %vm220, 0.0
      %222 = vst.msk [vmem:[#allocation2 + $0x18] sm:$0xff] %vm217, 0.0
      %223 = vst.msk [vmem:[#allocation2 + $0x20] sm:$0xff] %vm217, 0.0
      %224 = vst.msk [vmem:[#allocation2 + $0x28] sm:$0x3] %vm220, 0.0
      %225 = vst.msk [vmem:[#allocation2 + $0x30] sm:$0xff] %vm217, 0.0
      %226 = vst.msk [vmem:[#allocation2 + $0x38] sm:$0xff] %vm217, 0.0
      %227 = vst.msk [vmem:[#allocation2 + $0x40] sm:$0x3] %vm220, 0.0
      %228 = vst.msk [vmem:[#allocation2 + $0x48] sm:$0xff] %vm217, 0.0
      %229 = vst.msk [vmem:[#allocation2 + $0x50] sm:$0xff] %vm217, 0.0
      %230 = vst.msk [vmem:[#allocation2 + $0x58] sm:$0x3] %vm220, 0.0
      %231 = vst.msk [vmem:[#allocation2 + $0x60] sm:$0xff] %vm217, 0.0
      %232 = vst.msk [vmem:[#allocation2 + $0x68] sm:$0xff] %vm217, 0.0
      %233 = vst.msk [vmem:[#allocation2 + $0x70] sm:$0x3] %vm220, 0.0
      %234 = vst.msk [vmem:[#allocation2 + $0x78] sm:$0xff] %vm217, 0.0
      %235 = vst.msk [vmem:[#allocation2 + $0x80] sm:$0xff] %vm217, 0.0
      %236 = vst.msk [vmem:[#allocation2 + $0x88] sm:$0x3] %vm220, 0.0
      %237 = vst.msk [vmem:[#allocation2 + $0x90] sm:$0xff] %vm217, 0.0
      %238 = vst.msk [vmem:[#allocation2 + $0x98] sm:$0xff] %vm217, 0.0
      %239 = vst.msk [vmem:[#allocation2 + $0xa0] sm:$0x3] %vm220, 0.0
      %240 = vst.msk [vmem:[#allocation2 + $0xa8] sm:$0xff] %vm217, 0.0
      %241 = vst.msk [vmem:[#allocation2 + $0xb0] sm:$0xff] %vm217, 0.0
      %242 = vst.msk [vmem:[#allocation2 + $0xb8] sm:$0x3] %vm220, 0.0
      %243 = vst.msk [vmem:[#allocation2 + $0xc0] sm:$0xff] %vm217, 0.0
      %244 = vst.msk [vmem:[#allocation2 + $0xc8] sm:$0xff] %vm217, 0.0
      %245 = vst.msk [vmem:[#allocation2 + $0xd0] sm:$0x3] %vm220, 0.0
      %246 = vst.msk [vmem:[#allocation2 + $0xd8] sm:$0xff] %vm217, 0.0
      %247 = vst.msk [vmem:[#allocation2 + $0xe0] sm:$0xff] %vm217, 0.0
      %248 = vst.msk [vmem:[#allocation2 + $0xe8] sm:$0x3] %vm220, 0.0
      %249 = vst.msk [vmem:[#allocation2 + $0xf0] sm:$0xff] %vm217, 0.0
      %250 = vst.msk [vmem:[#allocation2 + $0xf8] sm:$0xff] %vm217, 0.0
      %251 = vst.msk [vmem:[#allocation2 + $0x100] sm:$0x3] %vm220, 0.0
      %252 = vst.msk [vmem:[#allocation2 + $0x108] sm:$0xff] %vm217, 0.0
      %253 = vst.msk [vmem:[#allocation2 + $0x110] sm:$0xff] %vm217, 0.0
      %254 = vst.msk [vmem:[#allocation2 + $0x118] sm:$0x3] %vm220, 0.0
      %255 = vst.msk [vmem:[#allocation2 + $0x120] sm:$0xff] %vm217, 0.0
      %256 = vst.msk [vmem:[#allocation2 + $0x128] sm:$0xff] %vm217, 0.0
      %257 = vst.msk [vmem:[#allocation2 + $0x130] sm:$0x3] %vm220, 0.0
      %258 = vst.msk [vmem:[#allocation2 + $0x138] sm:$0xff] %vm217, 0.0
      %259 = vst.msk [vmem:[#allocation2 + $0x140] sm:$0xff] %vm217, 0.0
      %260 = vst.msk [vmem:[#allocation2 + $0x148] sm:$0x3] %vm220, 0.0
      %261 = vst.msk [vmem:[#allocation2 + $0x150] sm:$0xff] %vm217, 0.0
      %262 = vst.msk [vmem:[#allocation2 + $0x158] sm:$0xff] %vm217, 0.0
      %263 = vst.msk [vmem:[#allocation2 + $0x160] sm:$0x3] %vm220, 0.0
      %264 = vst.msk [vmem:[#allocation2 + $0x168] sm:$0xff] %vm217, 0.0
      %265 = vst.msk [vmem:[#allocation2 + $0x170] sm:$0xff] %vm217, 0.0
      %266 = vst.msk [vmem:[#allocation2 + $0x178] sm:$0x3] %vm220, 0.0
      %267 = vst.msk [vmem:[#allocation2 + $0x180] sm:$0xff] %vm217, 0.0
      %268 = vst.msk [vmem:[#allocation2 + $0x188] sm:$0xff] %vm217, 0.0
      %269 = vst.msk [vmem:[#allocation2 + $0x190] sm:$0x3] %vm220, 0.0
      %270 = vst.msk [vmem:[#allocation2 + $0x198] sm:$0xff] %vm217, 0.0
      %271 = vst.msk [vmem:[#allocation2 + $0x1a0] sm:$0xff] %vm217, 0.0
      %272 = vst.msk [vmem:[#allocation2 + $0x1a8] sm:$0x3] %vm220, 0.0
      %v273 = vld [vmem:[%s203] sm:$0xf]
      %v274 = vld [vmem:[%s203 + $0x4] sm:$0xf]
      %v275 = vld [vmem:[%s203 + $0x8] sm:$0xf]
      %v276 = vld [vmem:[%s203 + $0xc] sm:$0xf]
      %v277 = vld [vmem:[%s203 + $0x10] sm:$0xf]
      %v278 = vld [vmem:[%s203 + $0x14] sm:$0xf]
      %v279 = vld [vmem:[%s203 + $0x18] sm:$0xf]
      %v280 = vld [vmem:[%s203 + $0x1c] sm:$0xf]
      %v281 = vld [vmem:[%s203 + $0x20] sm:$0xf]
      %v282 = vld [vmem:[%s203 + $0x24] sm:$0xf]
      %v283 = vld [vmem:[%s203 + $0x28] sm:$0xf]
      %v284 = vld [vmem:[%s203 + $0x2c] sm:$0xf]
      %v285 = vld [vmem:[%s203 + $0x30] sm:$0xf]
      %v286 = vld [vmem:[%s203 + $0x34] sm:$0xf]
      %v287 = vld [vmem:[%s203 + $0x38] sm:$0xf]
      %v288 = vld [vmem:[%s203 + $0x3c] sm:$0xf]
      %v289 = vld [vmem:[%s203 + $0x40] sm:$0xf]
      %v290 = vld [vmem:[%s203 + $0x44] sm:$0xf]
      %v291 = vld [vmem:[%s203 + $0x48] sm:$0xf]
      %v292 = vld [vmem:[%s203 + $0x4c] sm:$0xf]
      %v293 = vld [vmem:[%s203 + $0x50] sm:$0xf]
      %v294 = vld [vmem:[%s203 + $0x54] sm:$0xf]
      %v295 = vld [vmem:[%s203 + $0x58] sm:$0xf]
      %v296 = vld [vmem:[%s203 + $0x5c] sm:$0xf]
      %v297 = vld [vmem:[%s203 + $0x60] sm:$0xf]
      %v298 = vld [vmem:[%s203 + $0x64] sm:$0xf]
      %v299 = vld [vmem:[%s203 + $0x68] sm:$0xf]
      %v300 = vld [vmem:[%s203 + $0x6c] sm:$0xf]
      %v301 = vld [vmem:[%s203 + $0x70] sm:$0xf]
      %v302 = vld [vmem:[%s203 + $0x74] sm:$0xf]
      %v303 = vld [vmem:[%s203 + $0x78] sm:$0xf]
      %v304 = vld [vmem:[%s203 + $0x7c] sm:$0xf]
      %v305 = vunpack.c.l.bf16 %v273
      %v306 = vunpack.c.l.bf16 %v274
      %v307 = vunpack.c.l.bf16 %v275
      %v308 = vunpack.c.l.bf16 %v276
      %v309 = vunpack.c.l.bf16 %v277
      %v310 = vunpack.c.l.bf16 %v278
      %v311 = vunpack.c.l.bf16 %v279
      %v312 = vunpack.c.l.bf16 %v280
      %v313 = vunpack.c.l.bf16 %v281
      %v314 = vunpack.c.l.bf16 %v282
      %v315 = vunpack.c.l.bf16 %v283
      %v316 = vunpack.c.l.bf16 %v284
      %v317 = vunpack.c.l.bf16 %v285
      %v318 = vunpack.c.l.bf16 %v286
      %v319 = vunpack.c.l.bf16 %v287
      %v320 = vunpack.c.l.bf16 %v288
      %v321 = vunpack.c.l.bf16 %v289
      %v322 = vunpack.c.l.bf16 %v290
      %v323 = vunpack.c.l.bf16 %v291
      %v324 = vunpack.c.l.bf16 %v292
      %v325 = vunpack.c.l.bf16 %v293
      %v326 = vunpack.c.l.bf16 %v294
      %v327 = vunpack.c.l.bf16 %v295
      %v328 = vunpack.c.l.bf16 %v296
      %v329 = vunpack.c.l.bf16 %v297
      %v330 = vunpack.c.l.bf16 %v298
      %v331 = vunpack.c.l.bf16 %v299
      %v332 = vunpack.c.l.bf16 %v300
      %v333 = vunpack.c.l.bf16 %v301
      %v334 = vunpack.c.l.bf16 %v302
      %v335 = vunpack.c.l.bf16 %v303
      %v336 = vunpack.c.l.bf16 %v304
      %s337 = scalar_lea.vmem [#allocation2], 24
      %338 = vst.msk [vmem:[%s337 + $0x1] sm:$0xff] %vm217, %v305
      %339 = vst.msk [vmem:[%s337 + $0x9] sm:$0xff] %vm217, %v306
      %340 = vst.msk [vmem:[%s337 + $0x19] sm:$0xff] %vm217, %v307
      %341 = vst.msk [vmem:[%s337 + $0x21] sm:$0xff] %vm217, %v308
      %342 = vst.msk [vmem:[%s337 + $0x31] sm:$0xff] %vm217, %v309
      %343 = vst.msk [vmem:[%s337 + $0x39] sm:$0xff] %vm217, %v310
      %344 = vst.msk [vmem:[%s337 + $0x49] sm:$0xff] %vm217, %v311
      %345 = vst.msk [vmem:[%s337 + $0x51] sm:$0xff] %vm217, %v312
      %346 = vst.msk [vmem:[%s337 + $0x61] sm:$0xff] %vm217, %v313
      %347 = vst.msk [vmem:[%s337 + $0x69] sm:$0xff] %vm217, %v314
      %348 = vst.msk [vmem:[%s337 + $0x79] sm:$0xff] %vm217, %v315
      %349 = vst.msk [vmem:[%s337 + $0x81] sm:$0xff] %vm217, %v316
      %350 = vst.msk [vmem:[%s337 + $0x91] sm:$0xff] %vm217, %v317
      %351 = vst.msk [vmem:[%s337 + $0x99] sm:$0xff] %vm217, %v318
      %352 = vst.msk [vmem:[%s337 + $0xa9] sm:$0xff] %vm217, %v319
      %353 = vst.msk [vmem:[%s337 + $0xb1] sm:$0xff] %vm217, %v320
      %354 = vst.msk [vmem:[%s337 + $0xc1] sm:$0xff] %vm217, %v321
      %355 = vst.msk [vmem:[%s337 + $0xc9] sm:$0xff] %vm217, %v322
      %356 = vst.msk [vmem:[%s337 + $0xd9] sm:$0xff] %vm217, %v323
      %357 = vst.msk [vmem:[%s337 + $0xe1] sm:$0xff] %vm217, %v324
      %358 = vst.msk [vmem:[%s337 + $0xf1] sm:$0xff] %vm217, %v325
      %359 = vst.msk [vmem:[%s337 + $0xf9] sm:$0xff] %vm217, %v326
      %360 = vst.msk [vmem:[%s337 + $0x109] sm:$0xff] %vm217, %v327
      %361 = vst.msk [vmem:[%s337 + $0x111] sm:$0xff] %vm217, %v328
      %362 = vst.msk [vmem:[%s337 + $0x121] sm:$0xff] %vm217, %v329
      %363 = vst.msk [vmem:[%s337 + $0x129] sm:$0xff] %vm217, %v330
      %364 = vst.msk [vmem:[%s337 + $0x139] sm:$0xff] %vm217, %v331
      %365 = vst.msk [vmem:[%s337 + $0x141] sm:$0xff] %vm217, %v332
      %366 = vst.msk [vmem:[%s337 + $0x151] sm:$0xff] %vm217, %v333
      %367 = vst.msk [vmem:[%s337 + $0x159] sm:$0xff] %vm217, %v334
      %368 = vst.msk [vmem:[%s337 + $0x169] sm:$0xff] %vm217, %v335
      %369 = vst.msk [vmem:[%s337 + $0x171] sm:$0xff] %vm217, %v336
      %v370 = vld [vmem:[#allocation2] sm:$0xff]
      %v371 = vld [vmem:[#allocation2 + $0x8] sm:$0xff]
      %v372 = vld [vmem:[#allocation2 + $0x18] sm:$0xff]
      %v373 = vld [vmem:[#allocation2 + $0x20] sm:$0xff]
      %v374 = vld [vmem:[#allocation2 + $0x30] sm:$0xff]
      %v375 = vld [vmem:[#allocation2 + $0x38] sm:$0xff]
      %v376 = vld [vmem:[#allocation2 + $0x48] sm:$0xff]
      %v377 = vld [vmem:[#allocation2 + $0x50] sm:$0xff]
      %v378 = vld [vmem:[#allocation2 + $0x60] sm:$0xff]
      %v379 = vld [vmem:[#allocation2 + $0x68] sm:$0xff]
      %v380 = vld [vmem:[#allocation2 + $0x78] sm:$0xff]
      %v381 = vld [vmem:[#allocation2 + $0x80] sm:$0xff]
      %v382 = vld [vmem:[#allocation2 + $0x90] sm:$0xff]
      %v383 = vld [vmem:[#allocation2 + $0x98] sm:$0xff]
      %v384 = vld [vmem:[#allocation2 + $0xa8] sm:$0xff]
      %v385 = vld [vmem:[#allocation2 + $0xb0] sm:$0xff]
      %v386 = vld [vmem:[#allocation2 + $0xc0] sm:$0xff]
      %v387 = vld [vmem:[#allocation2 + $0xc8] sm:$0xff]
      %v388 = vld [vmem:[#allocation2 + $0xd8] sm:$0xff]
      %v389 = vld [vmem:[#allocation2 + $0xe0] sm:$0xff]
      %v390 = vld [vmem:[#allocation2 + $0xf0] sm:$0xff]
      %v391 = vld [vmem:[#allocation2 + $0xf8] sm:$0xff]
      %v392 = vld [vmem:[#allocation2 + $0x108] sm:$0xff]
      %v393 = vld [vmem:[#allocation2 + $0x110] sm:$0xff]
      %v394 = vld [vmem:[#allocation2 + $0x120] sm:$0xff]
      %v395 = vld [vmem:[#allocation2 + $0x128] sm:$0xff]
      %v396 = vld [vmem:[#allocation2 + $0x138] sm:$0xff]
      %v397 = vld [vmem:[#allocation2 + $0x140] sm:$0xff]
      %v398 = vld [vmem:[#allocation2 + $0x150] sm:$0xff]
      %v399 = vld [vmem:[#allocation2 + $0x158] sm:$0xff]
      %v400 = vld [vmem:[#allocation2 + $0x168] sm:$0xff]
      %v401 = vld [vmem:[#allocation2 + $0x170] sm:$0xff]
      %402 = vst.msk [vmem:[#allocation3] sm:$0xff] %vm217, %v370
      %403 = vst.msk [vmem:[#allocation3 + $0x8] sm:$0xff] %vm217, %v371
      %404 = vst.msk [vmem:[#allocation3 + $0x10] sm:$0xff] %vm217, %v372
      %405 = vst.msk [vmem:[#allocation3 + $0x18] sm:$0xff] %vm217, %v373
      %406 = vst.msk [vmem:[#allocation3 + $0x20] sm:$0xff] %vm217, %v374
      %407 = vst.msk [vmem:[#allocation3 + $0x28] sm:$0xff] %vm217, %v375
      %408 = vst.msk [vmem:[#allocation3 + $0x30] sm:$0xff] %vm217, %v376
      %409 = vst.msk [vmem:[#allocation3 + $0x38] sm:$0xff] %vm217, %v377
      %410 = vst.msk [vmem:[#allocation3 + $0x40] sm:$0xff] %vm217, %v378
      %411 = vst.msk [vmem:[#allocation3 + $0x48] sm:$0xff] %vm217, %v379
      %412 = vst.msk [vmem:[#allocation3 + $0x50] sm:$0xff] %vm217, %v380
      %413 = vst.msk [vmem:[#allocation3 + $0x58] sm:$0xff] %vm217, %v381
      %414 = vst.msk [vmem:[#allocation3 + $0x60] sm:$0xff] %vm217, %v382
      %415 = vst.msk [vmem:[#allocation3 + $0x68] sm:$0xff] %vm217, %v383
      %416 = vst.msk [vmem:[#allocation3 + $0x70] sm:$0xff] %vm217, %v384
      %417 = vst.msk [vmem:[#allocation3 + $0x78] sm:$0xff] %vm217, %v385
      %418 = vst.msk [vmem:[#allocation3 + $0x80] sm:$0xff] %vm217, %v386
      %419 = vst.msk [vmem:[#allocation3 + $0x88] sm:$0xff] %vm217, %v387
      %420 = vst.msk [vmem:[#allocation3 + $0x90] sm:$0xff] %vm217, %v388
      %421 = vst.msk [vmem:[#allocation3 + $0x98] sm:$0xff] %vm217, %v389
      %422 = vst.msk [vmem:[#allocation3 + $0xa0] sm:$0xff] %vm217, %v390
      %423 = vst.msk [vmem:[#allocation3 + $0xa8] sm:$0xff] %vm217, %v391
      %424 = vst.msk [vmem:[#allocation3 + $0xb0] sm:$0xff] %vm217, %v392
      %425 = vst.msk [vmem:[#allocation3 + $0xb8] sm:$0xff] %vm217, %v393
      %426 = vst.msk [vmem:[#allocation3 + $0xc0] sm:$0xff] %vm217, %v394
      %427 = vst.msk [vmem:[#allocation3 + $0xc8] sm:$0xff] %vm217, %v395
      %428 = vst.msk [vmem:[#allocation3 + $0xd0] sm:$0xff] %vm217, %v396
      %429 = vst.msk [vmem:[#allocation3 + $0xd8] sm:$0xff] %vm217, %v397
      %430 = vst.msk [vmem:[#allocation3 + $0xe0] sm:$0xff] %vm217, %v398
      %431 = vst.msk [vmem:[#allocation3 + $0xe8] sm:$0xff] %vm217, %v399
      %432 = vst.msk [vmem:[#allocation3 + $0xf0] sm:$0xff] %vm217, %v400
      %433 = vst.msk [vmem:[#allocation3 + $0xf8] sm:$0xff] %vm217, %v401
      %v434 = vld [vmem:[#allocation2 + $0x1] sm:$0xff]
      %v435 = vld [vmem:[#allocation2 + $0x9] sm:$0xff]
      %v436 = vld [vmem:[#allocation2 + $0x19] sm:$0xff]
      %v437 = vld [vmem:[#allocation2 + $0x21] sm:$0xff]
      %v438 = vld [vmem:[#allocation2 + $0x31] sm:$0xff]
      %v439 = vld [vmem:[#allocation2 + $0x39] sm:$0xff]
      %v440 = vld [vmem:[#allocation2 + $0x49] sm:$0xff]
      %v441 = vld [vmem:[#allocation2 + $0x51] sm:$0xff]
      %v442 = vld [vmem:[#allocation2 + $0x61] sm:$0xff]
      %v443 = vld [vmem:[#allocation2 + $0x69] sm:$0xff]
      %v444 = vld [vmem:[#allocation2 + $0x79] sm:$0xff]
      %v445 = vld [vmem:[#allocation2 + $0x81] sm:$0xff]
      %v446 = vld [vmem:[#allocation2 + $0x91] sm:$0xff]
      %v447 = vld [vmem:[#allocation2 + $0x99] sm:$0xff]
      %v448 = vld [vmem:[#allocation2 + $0xa9] sm:$0xff]
      %v449 = vld [vmem:[#allocation2 + $0xb1] sm:$0xff]
      %v450 = vld [vmem:[#allocation2 + $0xc1] sm:$0xff]
      %v451 = vld [vmem:[#allocation2 + $0xc9] sm:$0xff]
      %v452 = vld [vmem:[#allocation2 + $0xd9] sm:$0xff]
      %v453 = vld [vmem:[#allocation2 + $0xe1] sm:$0xff]
      %v454 = vld [vmem:[#allocation2 + $0xf1] sm:$0xff]
      %v455 = vld [vmem:[#allocation2 + $0xf9] sm:$0xff]
      %v456 = vld [vmem:[#allocation2 + $0x109] sm:$0xff]
      %v457 = vld [vmem:[#allocation2 + $0x111] sm:$0xff]
      %v458 = vld [vmem:[#allocation2 + $0x121] sm:$0xff]
      %v459 = vld [vmem:[#allocation2 + $0x129] sm:$0xff]
      %v460 = vld [vmem:[#allocation2 + $0x139] sm:$0xff]
      %v461 = vld [vmem:[#allocation2 + $0x141] sm:$0xff]
      %v462 = vld [vmem:[#allocation2 + $0x151] sm:$0xff]
      %v463 = vld [vmem:[#allocation2 + $0x159] sm:$0xff]
      %v464 = vld [vmem:[#allocation2 + $0x169] sm:$0xff]
      %v465 = vld [vmem:[#allocation2 + $0x171] sm:$0xff]
      %498 = vrot.lane.b32.xlu0 %v434, 4
      %v499 = vpop.permute.xlu0 %498
      %500 = vrot.lane.b32.xlu0 %v435, 4
      %v501 = vpop.permute.xlu0 %500
      %502 = vrot.lane.b32.xlu0 %v436, 4
      %v503 = vpop.permute.xlu0 %502
      %504 = vrot.lane.b32.xlu0 %v437, 4
      %v505 = vpop.permute.xlu0 %504
      %506 = vrot.lane.b32.xlu0 %v438, 4
      %v507 = vpop.permute.xlu0 %506
      %508 = vrot.lane.b32.xlu0 %v439, 4
      %v509 = vpop.permute.xlu0 %508
      %510 = vrot.lane.b32.xlu0 %v440, 4
      %v511 = vpop.permute.xlu0 %510
      %512 = vrot.lane.b32.xlu0 %v441, 4
      %v513 = vpop.permute.xlu0 %512
      %514 = vrot.lane.b32.xlu0 %v442, 4
      %v515 = vpop.permute.xlu0 %514
      %516 = vrot.lane.b32.xlu0 %v443, 4
      %v517 = vpop.permute.xlu0 %516
      %518 = vrot.lane.b32.xlu0 %v444, 4
      %v519 = vpop.permute.xlu0 %518
      %520 = vrot.lane.b32.xlu0 %v445, 4
      %v521 = vpop.permute.xlu0 %520
      %522 = vrot.lane.b32.xlu0 %v446, 4
      %v523 = vpop.permute.xlu0 %522
      %524 = vrot.lane.b32.xlu0 %v447, 4
      %v525 = vpop.permute.xlu0 %524
      %526 = vrot.lane.b32.xlu0 %v448, 4
      %v527 = vpop.permute.xlu0 %526
      %528 = vrot.lane.b32.xlu0 %v449, 4
      %v529 = vpop.permute.xlu0 %528
      %530 = vrot.lane.b32.xlu0 %v450, 4
      %v531 = vpop.permute.xlu0 %530
      %532 = vrot.lane.b32.xlu0 %v451, 4
      %v533 = vpop.permute.xlu0 %532
      %534 = vrot.lane.b32.xlu0 %v452, 4
      %v535 = vpop.permute.xlu0 %534
      %536 = vrot.lane.b32.xlu0 %v453, 4
      %v537 = vpop.permute.xlu0 %536
      %538 = vrot.lane.b32.xlu0 %v454, 4
      %v539 = vpop.permute.xlu0 %538
      %540 = vrot.lane.b32.xlu0 %v455, 4
      %v541 = vpop.permute.xlu0 %540
      %542 = vrot.lane.b32.xlu0 %v456, 4
      %v543 = vpop.permute.xlu0 %542
      %544 = vrot.lane.b32.xlu0 %v457, 4
      %v545 = vpop.permute.xlu0 %544
      %546 = vrot.lane.b32.xlu0 %v458, 4
      %v547 = vpop.permute.xlu0 %546
      %548 = vrot.lane.b32.xlu0 %v459, 4
      %v549 = vpop.permute.xlu0 %548
      %550 = vrot.lane.b32.xlu0 %v460, 4
      %v551 = vpop.permute.xlu0 %550
      %552 = vrot.lane.b32.xlu0 %v461, 4
      %v553 = vpop.permute.xlu0 %552
      %554 = vrot.lane.b32.xlu0 %v462, 4
      %v555 = vpop.permute.xlu0 %554
      %556 = vrot.lane.b32.xlu0 %v463, 4
      %v557 = vpop.permute.xlu0 %556
      %558 = vrot.lane.b32.xlu0 %v464, 4
      %v559 = vpop.permute.xlu0 %558
      %560 = vrot.lane.b32.xlu0 %v465, 4
      %v561 = vpop.permute.xlu0 %560
      %vm594 = vcmask 64544
      %595 = vst.msk [vmem:[#allocation3] sm:$0xff] %vm594, %v499
      %596 = vst.msk [vmem:[#allocation3 + $0x8] sm:$0xff] %vm594, %v501
      %597 = vst.msk [vmem:[#allocation3 + $0x10] sm:$0xff] %vm594, %v503
      %598 = vst.msk [vmem:[#allocation3 + $0x18] sm:$0xff] %vm594, %v505
      %599 = vst.msk [vmem:[#allocation3 + $0x20] sm:$0xff] %vm594, %v507
      %600 = vst.msk [vmem:[#allocation3 + $0x28] sm:$0xff] %vm594, %v509
      %601 = vst.msk [vmem:[#allocation3 + $0x30] sm:$0xff] %vm594, %v511
      %602 = vst.msk [vmem:[#allocation3 + $0x38] sm:$0xff] %vm594, %v513
      %603 = vst.msk [vmem:[#allocation3 + $0x40] sm:$0xff] %vm594, %v515
      %604 = vst.msk [vmem:[#allocation3 + $0x48] sm:$0xff] %vm594, %v517
      %605 = vst.msk [vmem:[#allocation3 + $0x50] sm:$0xff] %vm594, %v519
      %606 = vst.msk [vmem:[#allocation3 + $0x58] sm:$0xff] %vm594, %v521
      %607 = vst.msk [vmem:[#allocation3 + $0x60] sm:$0xff] %vm594, %v523
      %608 = vst.msk [vmem:[#allocation3 + $0x68] sm:$0xff] %vm594, %v525
      %609 = vst.msk [vmem:[#allocation3 + $0x70] sm:$0xff] %vm594, %v527
      %610 = vst.msk [vmem:[#allocation3 + $0x78] sm:$0xff] %vm594, %v529
      %611 = vst.msk [vmem:[#allocation3 + $0x80] sm:$0xff] %vm594, %v531
      %612 = vst.msk [vmem:[#allocation3 + $0x88] sm:$0xff] %vm594, %v533
      %613 = vst.msk [vmem:[#allocation3 + $0x90] sm:$0xff] %vm594, %v535
      %614 = vst.msk [vmem:[#allocation3 + $0x98] sm:$0xff] %vm594, %v537
      %615 = vst.msk [vmem:[#allocation3 + $0xa0] sm:$0xff] %vm594, %v539
      %616 = vst.msk [vmem:[#allocation3 + $0xa8] sm:$0xff] %vm594, %v541
      %617 = vst.msk [vmem:[#allocation3 + $0xb0] sm:$0xff] %vm594, %v543
      %618 = vst.msk [vmem:[#allocation3 + $0xb8] sm:$0xff] %vm594, %v545
      %619 = vst.msk [vmem:[#allocation3 + $0xc0] sm:$0xff] %vm594, %v547
      %620 = vst.msk [vmem:[#allocation3 + $0xc8] sm:$0xff] %vm594, %v549
      %621 = vst.msk [vmem:[#allocation3 + $0xd0] sm:$0xff] %vm594, %v551
      %622 = vst.msk [vmem:[#allocation3 + $0xd8] sm:$0xff] %vm594, %v553
      %623 = vst.msk [vmem:[#allocation3 + $0xe0] sm:$0xff] %vm594, %v555
      %624 = vst.msk [vmem:[#allocation3 + $0xe8] sm:$0xff] %vm594, %v557
      %625 = vst.msk [vmem:[#allocation3 + $0xf0] sm:$0xff] %vm594, %v559
      %626 = vst.msk [vmem:[#allocation3 + $0xf8] sm:$0xff] %vm594, %v561
      %v627 = vld [vmem:[#allocation2 + $0x2] sm:$0xff]
      %v628 = vld [vmem:[#allocation2 + $0xa] sm:$0xff]
      %v629 = vld [vmem:[#allocation2 + $0x1a] sm:$0xff]
      %v630 = vld [vmem:[#allocation2 + $0x22] sm:$0xff]
      %v631 = vld [vmem:[#allocation2 + $0x32] sm:$0xff]
      %v632 = vld [vmem:[#allocation2 + $0x3a] sm:$0xff]
      %v633 = vld [vmem:[#allocation2 + $0x4a] sm:$0xff]
      %v634 = vld [vmem:[#allocation2 + $0x52] sm:$0xff]
      %v635 = vld [vmem:[#allocation2 + $0x62] sm:$0xff]
      %v636 = vld [vmem:[#allocation2 + $0x6a] sm:$0xff]
      %v637 = vld [vmem:[#allocation2 + $0x7a] sm:$0xff]
      %v638 = vld [vmem:[#allocation2 + $0x82] sm:$0xff]
      %v639 = vld [vmem:[#allocation2 + $0x92] sm:$0xff]
      %v640 = vld [vmem:[#allocation2 + $0x9a] sm:$0xff]
      %v641 = vld [vmem:[#allocation2 + $0xaa] sm:$0xff]
      %v642 = vld [vmem:[#allocation2 + $0xb2] sm:$0xff]
      %v643 = vld [vmem:[#allocation2 + $0xc2] sm:$0xff]
      %v644 = vld [vmem:[#allocation2 + $0xca] sm:$0xff]
      %v645 = vld [vmem:[#allocation2 + $0xda] sm:$0xff]
      %v646 = vld [vmem:[#allocation2 + $0xe2] sm:$0xff]
      %v647 = vld [vmem:[#allocation2 + $0xf2] sm:$0xff]
      %v648 = vld [vmem:[#allocation2 + $0xfa] sm:$0xff]
      %v649 = vld [vmem:[#allocation2 + $0x10a] sm:$0xff]
      %v650 = vld [vmem:[#allocation2 + $0x112] sm:$0xff]
      %v651 = vld [vmem:[#allocation2 + $0x122] sm:$0xff]
      %v652 = vld [vmem:[#allocation2 + $0x12a] sm:$0xff]
      %v653 = vld [vmem:[#allocation2 + $0x13a] sm:$0xff]
      %v654 = vld [vmem:[#allocation2 + $0x142] sm:$0xff]
      %v655 = vld [vmem:[#allocation2 + $0x152] sm:$0xff]
      %v656 = vld [vmem:[#allocation2 + $0x15a] sm:$0xff]
      %v657 = vld [vmem:[#allocation2 + $0x16a] sm:$0xff]
      %v658 = vld [vmem:[#allocation2 + $0x172] sm:$0xff]
      %691 = vrot.lane.b32.xlu0 %v627, 8
      %v692 = vpop.permute.xlu0 %691
      %693 = vrot.lane.b32.xlu0 %v628, 8
      %v694 = vpop.permute.xlu0 %693
      %695 = vrot.lane.b32.xlu0 %v629, 8
      %v696 = vpop.permute.xlu0 %695
      %697 = vrot.lane.b32.xlu0 %v630, 8
      %v698 = vpop.permute.xlu0 %697
      %699 = vrot.lane.b32.xlu0 %v631, 8
      %v700 = vpop.permute.xlu0 %699
      %701 = vrot.lane.b32.xlu0 %v632, 8
      %v702 = vpop.permute.xlu0 %701
      %703 = vrot.lane.b32.xlu0 %v633, 8
      %v704 = vpop.permute.xlu0 %703
      %705 = vrot.lane.b32.xlu0 %v634, 8
      %v706 = vpop.permute.xlu0 %705
      %707 = vrot.lane.b32.xlu0 %v635, 8
      %v708 = vpop.permute.xlu0 %707
      %709 = vrot.lane.b32.xlu0 %v636, 8
      %v710 = vpop.permute.xlu0 %709
      %711 = vrot.lane.b32.xlu0 %v637, 8
      %v712 = vpop.permute.xlu0 %711
      %713 = vrot.lane.b32.xlu0 %v638, 8
      %v714 = vpop.permute.xlu0 %713
      %715 = vrot.lane.b32.xlu0 %v639, 8
      %v716 = vpop.permute.xlu0 %715
      %717 = vrot.lane.b32.xlu0 %v640, 8
      %v718 = vpop.permute.xlu0 %717
      %719 = vrot.lane.b32.xlu0 %v641, 8
      %v720 = vpop.permute.xlu0 %719
      %721 = vrot.lane.b32.xlu0 %v642, 8
      %v722 = vpop.permute.xlu0 %721
      %723 = vrot.lane.b32.xlu0 %v643, 8
      %v724 = vpop.permute.xlu0 %723
      %725 = vrot.lane.b32.xlu0 %v644, 8
      %v726 = vpop.permute.xlu0 %725
      %727 = vrot.lane.b32.xlu0 %v645, 8
      %v728 = vpop.permute.xlu0 %727
      %729 = vrot.lane.b32.xlu0 %v646, 8
      %v730 = vpop.permute.xlu0 %729
      %731 = vrot.lane.b32.xlu0 %v647, 8
      %v732 = vpop.permute.xlu0 %731
      %733 = vrot.lane.b32.xlu0 %v648, 8
      %v734 = vpop.permute.xlu0 %733
      %735 = vrot.lane.b32.xlu0 %v649, 8
      %v736 = vpop.permute.xlu0 %735
      %737 = vrot.lane.b32.xlu0 %v650, 8
      %v738 = vpop.permute.xlu0 %737
      %739 = vrot.lane.b32.xlu0 %v651, 8
      %v740 = vpop.permute.xlu0 %739
      %741 = vrot.lane.b32.xlu0 %v652, 8
      %v742 = vpop.permute.xlu0 %741
      %743 = vrot.lane.b32.xlu0 %v653, 8
      %v744 = vpop.permute.xlu0 %743
      %745 = vrot.lane.b32.xlu0 %v654, 8
      %v746 = vpop.permute.xlu0 %745
      %747 = vrot.lane.b32.xlu0 %v655, 8
      %v748 = vpop.permute.xlu0 %747
      %749 = vrot.lane.b32.xlu0 %v656, 8
      %v750 = vpop.permute.xlu0 %749
      %751 = vrot.lane.b32.xlu0 %v657, 8
      %v752 = vpop.permute.xlu0 %751
      %753 = vrot.lane.b32.xlu0 %v658, 8
      %v754 = vpop.permute.xlu0 %753
      %vm787 = vcmask 97344
      %788 = vst.msk [vmem:[#allocation3] sm:$0xff] %vm787, %v692
      %789 = vst.msk [vmem:[#allocation3 + $0x8] sm:$0xff] %vm787, %v694
      %790 = vst.msk [vmem:[#allocation3 + $0x10] sm:$0xff] %vm787, %v696
      %791 = vst.msk [vmem:[#allocation3 + $0x18] sm:$0xff] %vm787, %v698
      %792 = vst.msk [vmem:[#allocation3 + $0x20] sm:$0xff] %vm787, %v700
      %793 = vst.msk [vmem:[#allocation3 + $0x28] sm:$0xff] %vm787, %v702
      %794 = vst.msk [vmem:[#allocation3 + $0x30] sm:$0xff] %vm787, %v704
      %795 = vst.msk [vmem:[#allocation3 + $0x38] sm:$0xff] %vm787, %v706
      %796 = vst.msk [vmem:[#allocation3 + $0x40] sm:$0xff] %vm787, %v708
      %797 = vst.msk [vmem:[#allocation3 + $0x48] sm:$0xff] %vm787, %v710
      %798 = vst.msk [vmem:[#allocation3 + $0x50] sm:$0xff] %vm787, %v712
      %799 = vst.msk [vmem:[#allocation3 + $0x58] sm:$0xff] %vm787, %v714
      %800 = vst.msk [vmem:[#allocation3 + $0x60] sm:$0xff] %vm787, %v716
      %801 = vst.msk [vmem:[#allocation3 + $0x68] sm:$0xff] %vm787, %v718
      %802 = vst.msk [vmem:[#allocation3 + $0x70] sm:$0xff] %vm787, %v720
      %803 = vst.msk [vmem:[#allocation3 + $0x78] sm:$0xff] %vm787, %v722
      %804 = vst.msk [vmem:[#allocation3 + $0x80] sm:$0xff] %vm787, %v724
      %805 = vst.msk [vmem:[#allocation3 + $0x88] sm:$0xff] %vm787, %v726
      %806 = vst.msk [vmem:[#allocation3 + $0x90] sm:$0xff] %vm787, %v728
      %807 = vst.msk [vmem:[#allocation3 + $0x98] sm:$0xff] %vm787, %v730
      %808 = vst.msk [vmem:[#allocation3 + $0xa0] sm:$0xff] %vm787, %v732
      %809 = vst.msk [vmem:[#allocation3 + $0xa8] sm:$0xff] %vm787, %v734
      %810 = vst.msk [vmem:[#allocation3 + $0xb0] sm:$0xff] %vm787, %v736
      %811 = vst.msk [vmem:[#allocation3 + $0xb8] sm:$0xff] %vm787, %v738
      %812 = vst.msk [vmem:[#allocation3 + $0xc0] sm:$0xff] %vm787, %v740
      %813 = vst.msk [vmem:[#allocation3 + $0xc8] sm:$0xff] %vm787, %v742
      %814 = vst.msk [vmem:[#allocation3 + $0xd0] sm:$0xff] %vm787, %v744
      %815 = vst.msk [vmem:[#allocation3 + $0xd8] sm:$0xff] %vm787, %v746
      %816 = vst.msk [vmem:[#allocation3 + $0xe0] sm:$0xff] %vm787, %v748
      %817 = vst.msk [vmem:[#allocation3 + $0xe8] sm:$0xff] %vm787, %v750
      %818 = vst.msk [vmem:[#allocation3 + $0xf0] sm:$0xff] %vm787, %v752
      %819 = vst.msk [vmem:[#allocation3 + $0xf8] sm:$0xff] %vm787, %v754
      %v820 = vld [vmem:[%s337] sm:$0xff]
      %v821 = vld [vmem:[%s337 + $0x8] sm:$0xff]
      %v822 = vld [vmem:[%s337 + $0x18] sm:$0xff]
      %v823 = vld [vmem:[%s337 + $0x20] sm:$0xff]
      %v824 = vld [vmem:[%s337 + $0x30] sm:$0xff]
      %v825 = vld [vmem:[%s337 + $0x38] sm:$0xff]
      %v826 = vld [vmem:[%s337 + $0x48] sm:$0xff]
      %v827 = vld [vmem:[%s337 + $0x50] sm:$0xff]
      %v828 = vld [vmem:[%s337 + $0x60] sm:$0xff]
      %v829 = vld [vmem:[%s337 + $0x68] sm:$0xff]
      %v830 = vld [vmem:[%s337 + $0x78] sm:$0xff]
      %v831 = vld [vmem:[%s337 + $0x80] sm:$0xff]
      %v832 = vld [vmem:[%s337 + $0x90] sm:$0xff]
      %v833 = vld [vmem:[%s337 + $0x98] sm:$0xff]
      %v834 = vld [vmem:[%s337 + $0xa8] sm:$0xff]
      %v835 = vld [vmem:[%s337 + $0xb0] sm:$0xff]
      %v836 = vld [vmem:[%s337 + $0xc0] sm:$0xff]
      %v837 = vld [vmem:[%s337 + $0xc8] sm:$0xff]
      %v838 = vld [vmem:[%s337 + $0xd8] sm:$0xff]
      %v839 = vld [vmem:[%s337 + $0xe0] sm:$0xff]
      %v840 = vld [vmem:[%s337 + $0xf0] sm:$0xff]
      %v841 = vld [vmem:[%s337 + $0xf8] sm:$0xff]
      %v842 = vld [vmem:[%s337 + $0x108] sm:$0xff]
      %v843 = vld [vmem:[%s337 + $0x110] sm:$0xff]
      %v844 = vld [vmem:[%s337 + $0x120] sm:$0xff]
      %v845 = vld [vmem:[%s337 + $0x128] sm:$0xff]
      %v846 = vld [vmem:[%s337 + $0x138] sm:$0xff]
      %v847 = vld [vmem:[%s337 + $0x140] sm:$0xff]
      %v848 = vld [vmem:[%s337 + $0x150] sm:$0xff]
      %v849 = vld [vmem:[%s337 + $0x158] sm:$0xff]
      %v850 = vld [vmem:[%s337 + $0x168] sm:$0xff]
      %v851 = vld [vmem:[%s337 + $0x170] sm:$0xff]
      %884 = vrot.lane.b32.xlu0 %v820, 12
      %v885 = vpop.permute.xlu0 %884
      %886 = vrot.lane.b32.xlu0 %v821, 12
      %v887 = vpop.permute.xlu0 %886
      %888 = vrot.lane.b32.xlu0 %v822, 12
      %v889 = vpop.permute.xlu0 %888
      %890 = vrot.lane.b32.xlu0 %v823, 12
      %v891 = vpop.permute.xlu0 %890
      %892 = vrot.lane.b32.xlu0 %v824, 12
      %v893 = vpop.permute.xlu0 %892
      %894 = vrot.lane.b32.xlu0 %v825, 12
      %v895 = vpop.permute.xlu0 %894
      %896 = vrot.lane.b32.xlu0 %v826, 12
      %v897 = vpop.permute.xlu0 %896
      %898 = vrot.lane.b32.xlu0 %v827, 12
      %v899 = vpop.permute.xlu0 %898
      %900 = vrot.lane.b32.xlu0 %v828, 12
      %v901 = vpop.permute.xlu0 %900
      %902 = vrot.lane.b32.xlu0 %v829, 12
      %v903 = vpop.permute.xlu0 %902
      %904 = vrot.lane.b32.xlu0 %v830, 12
      %v905 = vpop.permute.xlu0 %904
      %906 = vrot.lane.b32.xlu0 %v831, 12
      %v907 = vpop.permute.xlu0 %906
      %908 = vrot.lane.b32.xlu0 %v832, 12
      %v909 = vpop.permute.xlu0 %908
      %910 = vrot.lane.b32.xlu0 %v833, 12
      %v911 = vpop.permute.xlu0 %910
      %912 = vrot.lane.b32.xlu0 %v834, 12
      %v913 = vpop.permute.xlu0 %912
      %914 = vrot.lane.b32.xlu0 %v835, 12
      %v915 = vpop.permute.xlu0 %914
      %916 = vrot.lane.b32.xlu0 %v836, 12
      %v917 = vpop.permute.xlu0 %916
      %918 = vrot.lane.b32.xlu0 %v837, 12
      %v919 = vpop.permute.xlu0 %918
      %920 = vrot.lane.b32.xlu0 %v838, 12
      %v921 = vpop.permute.xlu0 %920
      %922 = vrot.lane.b32.xlu0 %v839, 12
      %v923 = vpop.permute.xlu0 %922
      %924 = vrot.lane.b32.xlu0 %v840, 12
      %v925 = vpop.permute.xlu0 %924
      %926 = vrot.lane.b32.xlu0 %v841, 12
      %v927 = vpop.permute.xlu0 %926
      %928 = vrot.lane.b32.xlu0 %v842, 12
      %v929 = vpop.permute.xlu0 %928
      %930 = vrot.lane.b32.xlu0 %v843, 12
      %v931 = vpop.permute.xlu0 %930
      %932 = vrot.lane.b32.xlu0 %v844, 12
      %v933 = vpop.permute.xlu0 %932
      %934 = vrot.lane.b32.xlu0 %v845, 12
      %v935 = vpop.permute.xlu0 %934
      %936 = vrot.lane.b32.xlu0 %v846, 12
      %v937 = vpop.permute.xlu0 %936
      %938 = vrot.lane.b32.xlu0 %v847, 12
      %v939 = vpop.permute.xlu0 %938
      %940 = vrot.lane.b32.xlu0 %v848, 12
      %v941 = vpop.permute.xlu0 %940
      %942 = vrot.lane.b32.xlu0 %v849, 12
      %v943 = vpop.permute.xlu0 %942
      %944 = vrot.lane.b32.xlu0 %v850, 12
      %v945 = vpop.permute.xlu0 %944
      %946 = vrot.lane.b32.xlu0 %v851, 12
      %v947 = vpop.permute.xlu0 %946
      %vm980 = vcmask 130144
      %981 = vst.msk [vmem:[#allocation3] sm:$0xff] %vm980, %v885
      %982 = vst.msk [vmem:[#allocation3 + $0x8] sm:$0xff] %vm980, %v887
      %983 = vst.msk [vmem:[#allocation3 + $0x10] sm:$0xff] %vm980, %v889
      %984 = vst.msk [vmem:[#allocation3 + $0x18] sm:$0xff] %vm980, %v891
      %985 = vst.msk [vmem:[#allocation3 + $0x20] sm:$0xff] %vm980, %v893
      %986 = vst.msk [vmem:[#allocation3 + $0x28] sm:$0xff] %vm980, %v895
      %987 = vst.msk [vmem:[#allocation3 + $0x30] sm:$0xff] %vm980, %v897
      %988 = vst.msk [vmem:[#allocation3 + $0x38] sm:$0xff] %vm980, %v899
      %989 = vst.msk [vmem:[#allocation3 + $0x40] sm:$0xff] %vm980, %v901
      %990 = vst.msk [vmem:[#allocation3 + $0x48] sm:$0xff] %vm980, %v903
      %991 = vst.msk [vmem:[#allocation3 + $0x50] sm:$0xff] %vm980, %v905
      %992 = vst.msk [vmem:[#allocation3 + $0x58] sm:$0xff] %vm980, %v907
      %993 = vst.msk [vmem:[#allocation3 + $0x60] sm:$0xff] %vm980, %v909
      %994 = vst.msk [vmem:[#allocation3 + $0x68] sm:$0xff] %vm980, %v911
      %995 = vst.msk [vmem:[#allocation3 + $0x70] sm:$0xff] %vm980, %v913
      %996 = vst.msk [vmem:[#allocation3 + $0x78] sm:$0xff] %vm980, %v915
      %997 = vst.msk [vmem:[#allocation3 + $0x80] sm:$0xff] %vm980, %v917
      %998 = vst.msk [vmem:[#allocation3 + $0x88] sm:$0xff] %vm980, %v919
      %999 = vst.msk [vmem:[#allocation3 + $0x90] sm:$0xff] %vm980, %v921
      %1000 = vst.msk [vmem:[#allocation3 + $0x98] sm:$0xff] %vm980, %v923
      %1001 = vst.msk [vmem:[#allocation3 + $0xa0] sm:$0xff] %vm980, %v925
      %1002 = vst.msk [vmem:[#allocation3 + $0xa8] sm:$0xff] %vm980, %v927
      %1003 = vst.msk [vmem:[#allocation3 + $0xb0] sm:$0xff] %vm980, %v929
      %1004 = vst.msk [vmem:[#allocation3 + $0xb8] sm:$0xff] %vm980, %v931
      %1005 = vst.msk [vmem:[#allocation3 + $0xc0] sm:$0xff] %vm980, %v933
      %1006 = vst.msk [vmem:[#allocation3 + $0xc8] sm:$0xff] %vm980, %v935
      %1007 = vst.msk [vmem:[#allocation3 + $0xd0] sm:$0xff] %vm980, %v937
      %1008 = vst.msk [vmem:[#allocation3 + $0xd8] sm:$0xff] %vm980, %v939
      %1009 = vst.msk [vmem:[#allocation3 + $0xe0] sm:$0xff] %vm980, %v941
      %1010 = vst.msk [vmem:[#allocation3 + $0xe8] sm:$0xff] %vm980, %v943
      %1011 = vst.msk [vmem:[#allocation3 + $0xf0] sm:$0xff] %vm980, %v945
      %1012 = vst.msk [vmem:[#allocation3 + $0xf8] sm:$0xff] %vm980, %v947
      %v1013 = vld [vmem:[%s337 + $0x1] sm:$0xff]
      %v1014 = vld [vmem:[%s337 + $0x9] sm:$0xff]
      %v1015 = vld [vmem:[%s337 + $0x19] sm:$0xff]
      %v1016 = vld [vmem:[%s337 + $0x21] sm:$0xff]
      %v1017 = vld [vmem:[%s337 + $0x31] sm:$0xff]
      %v1018 = vld [vmem:[%s337 + $0x39] sm:$0xff]
      %v1019 = vld [vmem:[%s337 + $0x49] sm:$0xff]
      %v1020 = vld [vmem:[%s337 + $0x51] sm:$0xff]
      %v1021 = vld [vmem:[%s337 + $0x61] sm:$0xff]
      %v1022 = vld [vmem:[%s337 + $0x69] sm:$0xff]
      %v1023 = vld [vmem:[%s337 + $0x79] sm:$0xff]
      %v1024 = vld [vmem:[%s337 + $0x81] sm:$0xff]
      %v1025 = vld [vmem:[%s337 + $0x91] sm:$0xff]
      %v1026 = vld [vmem:[%s337 + $0x99] sm:$0xff]
      %v1027 = vld [vmem:[%s337 + $0xa9] sm:$0xff]
      %v1028 = vld [vmem:[%s337 + $0xb1] sm:$0xff]
      %v1029 = vld [vmem:[%s337 + $0xc1] sm:$0xff]
      %v1030 = vld [vmem:[%s337 + $0xc9] sm:$0xff]
      %v1031 = vld [vmem:[%s337 + $0xd9] sm:$0xff]
      %v1032 = vld [vmem:[%s337 + $0xe1] sm:$0xff]
      %v1033 = vld [vmem:[%s337 + $0xf1] sm:$0xff]
      %v1034 = vld [vmem:[%s337 + $0xf9] sm:$0xff]
      %v1035 = vld [vmem:[%s337 + $0x109] sm:$0xff]
      %v1036 = vld [vmem:[%s337 + $0x111] sm:$0xff]
      %v1037 = vld [vmem:[%s337 + $0x121] sm:$0xff]
      %v1038 = vld [vmem:[%s337 + $0x129] sm:$0xff]
      %v1039 = vld [vmem:[%s337 + $0x139] sm:$0xff]
      %v1040 = vld [vmem:[%s337 + $0x141] sm:$0xff]
      %v1041 = vld [vmem:[%s337 + $0x151] sm:$0xff]
      %v1042 = vld [vmem:[%s337 + $0x159] sm:$0xff]
      %v1043 = vld [vmem:[%s337 + $0x169] sm:$0xff]
      %v1044 = vld [vmem:[%s337 + $0x171] sm:$0xff]
      %1077 = vrot.lane.b32.xlu0 %v1013, 16
      %v1078 = vpop.permute.xlu0 %1077
      %1079 = vrot.lane.b32.xlu0 %v1014, 16
      %v1080 = vpop.permute.xlu0 %1079
      %1081 = vrot.lane.b32.xlu0 %v1015, 16
      %v1082 = vpop.permute.xlu0 %1081
      %1083 = vrot.lane.b32.xlu0 %v1016, 16
      %v1084 = vpop.permute.xlu0 %1083
      %1085 = vrot.lane.b32.xlu0 %v1017, 16
      %v1086 = vpop.permute.xlu0 %1085
      %1087 = vrot.lane.b32.xlu0 %v1018, 16
      %v1088 = vpop.permute.xlu0 %1087
      %1089 = vrot.lane.b32.xlu0 %v1019, 16
      %v1090 = vpop.permute.xlu0 %1089
      %1091 = vrot.lane.b32.xlu0 %v1020, 16
      %v1092 = vpop.permute.xlu0 %1091
      %1093 = vrot.lane.b32.xlu0 %v1021, 16
      %v1094 = vpop.permute.xlu0 %1093
      %1095 = vrot.lane.b32.xlu0 %v1022, 16
      %v1096 = vpop.permute.xlu0 %1095
      %1097 = vrot.lane.b32.xlu0 %v1023, 16
      %v1098 = vpop.permute.xlu0 %1097
      %1099 = vrot.lane.b32.xlu0 %v1024, 16
      %v1100 = vpop.permute.xlu0 %1099
      %1101 = vrot.lane.b32.xlu0 %v1025, 16
      %v1102 = vpop.permute.xlu0 %1101
      %1103 = vrot.lane.b32.xlu0 %v1026, 16
      %v1104 = vpop.permute.xlu0 %1103
      %1105 = vrot.lane.b32.xlu0 %v1027, 16
      %v1106 = vpop.permute.xlu0 %1105
      %1107 = vrot.lane.b32.xlu0 %v1028, 16
      %v1108 = vpop.permute.xlu0 %1107
      %1109 = vrot.lane.b32.xlu0 %v1029, 16
      %v1110 = vpop.permute.xlu0 %1109
      %1111 = vrot.lane.b32.xlu0 %v1030, 16
      %v1112 = vpop.permute.xlu0 %1111
      %1113 = vrot.lane.b32.xlu0 %v1031, 16
      %v1114 = vpop.permute.xlu0 %1113
      %1115 = vrot.lane.b32.xlu0 %v1032, 16
      %v1116 = vpop.permute.xlu0 %1115
      %1117 = vrot.lane.b32.xlu0 %v1033, 16
      %v1118 = vpop.permute.xlu0 %1117
      %1119 = vrot.lane.b32.xlu0 %v1034, 16
      %v1120 = vpop.permute.xlu0 %1119
      %1121 = vrot.lane.b32.xlu0 %v1035, 16
      %v1122 = vpop.permute.xlu0 %1121
      %1123 = vrot.lane.b32.xlu0 %v1036, 16
      %v1124 = vpop.permute.xlu0 %1123
      %1125 = vrot.lane.b32.xlu0 %v1037, 16
      %v1126 = vpop.permute.xlu0 %1125
      %1127 = vrot.lane.b32.xlu0 %v1038, 16
      %v1128 = vpop.permute.xlu0 %1127
      %1129 = vrot.lane.b32.xlu0 %v1039, 16
      %v1130 = vpop.permute.xlu0 %1129
      %1131 = vrot.lane.b32.xlu0 %v1040, 16
      %v1132 = vpop.permute.xlu0 %1131
      %1133 = vrot.lane.b32.xlu0 %v1041, 16
      %v1134 = vpop.permute.xlu0 %1133
      %1135 = vrot.lane.b32.xlu0 %v1042, 16
      %v1136 = vpop.permute.xlu0 %1135
      %1137 = vrot.lane.b32.xlu0 %v1043, 16
      %v1138 = vpop.permute.xlu0 %1137
      %1139 = vrot.lane.b32.xlu0 %v1044, 16
      %v1140 = vpop.permute.xlu0 %1139
      %vm1173 = vcmask 162944
      %1174 = vst.msk [vmem:[#allocation3] sm:$0xff] %vm1173, %v1078
      %1175 = vst.msk [vmem:[#allocation3 + $0x8] sm:$0xff] %vm1173, %v1080
      %1176 = vst.msk [vmem:[#allocation3 + $0x10] sm:$0xff] %vm1173, %v1082
      %1177 = vst.msk [vmem:[#allocation3 + $0x18] sm:$0xff] %vm1173, %v1084
      %1178 = vst.msk [vmem:[#allocation3 + $0x20] sm:$0xff] %vm1173, %v1086
      %1179 = vst.msk [vmem:[#allocation3 + $0x28] sm:$0xff] %vm1173, %v1088
      %1180 = vst.msk [vmem:[#allocation3 + $0x30] sm:$0xff] %vm1173, %v1090
      %1181 = vst.msk [vmem:[#allocation3 + $0x38] sm:$0xff] %vm1173, %v1092
      %1182 = vst.msk [vmem:[#allocation3 + $0x40] sm:$0xff] %vm1173, %v1094
      %1183 = vst.msk [vmem:[#allocation3 + $0x48] sm:$0xff] %vm1173, %v1096
      %1184 = vst.msk [vmem:[#allocation3 + $0x50] sm:$0xff] %vm1173, %v1098
      %1185 = vst.msk [vmem:[#allocation3 + $0x58] sm:$0xff] %vm1173, %v1100
      %1186 = vst.msk [vmem:[#allocation3 + $0x60] sm:$0xff] %vm1173, %v1102
      %1187 = vst.msk [vmem:[#allocation3 + $0x68] sm:$0xff] %vm1173, %v1104
      %1188 = vst.msk [vmem:[#allocation3 + $0x70] sm:$0xff] %vm1173, %v1106
      %1189 = vst.msk [vmem:[#allocation3 + $0x78] sm:$0xff] %vm1173, %v1108
      %1190 = vst.msk [vmem:[#allocation3 + $0x80] sm:$0xff] %vm1173, %v1110
      %1191 = vst.msk [vmem:[#allocation3 + $0x88] sm:$0xff] %vm1173, %v1112
      %1192 = vst.msk [vmem:[#allocation3 + $0x90] sm:$0xff] %vm1173, %v1114
      %1193 = vst.msk [vmem:[#allocation3 + $0x98] sm:$0xff] %vm1173, %v1116
      %1194 = vst.msk [vmem:[#allocation3 + $0xa0] sm:$0xff] %vm1173, %v1118
      %1195 = vst.msk [vmem:[#allocation3 + $0xa8] sm:$0xff] %vm1173, %v1120
      %1196 = vst.msk [vmem:[#allocation3 + $0xb0] sm:$0xff] %vm1173, %v1122
      %1197 = vst.msk [vmem:[#allocation3 + $0xb8] sm:$0xff] %vm1173, %v1124
      %1198 = vst.msk [vmem:[#allocation3 + $0xc0] sm:$0xff] %vm1173, %v1126
      %1199 = vst.msk [vmem:[#allocation3 + $0xc8] sm:$0xff] %vm1173, %v1128
      %1200 = vst.msk [vmem:[#allocation3 + $0xd0] sm:$0xff] %vm1173, %v1130
      %1201 = vst.msk [vmem:[#allocation3 + $0xd8] sm:$0xff] %vm1173, %v1132
      %1202 = vst.msk [vmem:[#allocation3 + $0xe0] sm:$0xff] %vm1173, %v1134
      %1203 = vst.msk [vmem:[#allocation3 + $0xe8] sm:$0xff] %vm1173, %v1136
      %1204 = vst.msk [vmem:[#allocation3 + $0xf0] sm:$0xff] %vm1173, %v1138
      %1205 = vst.msk [vmem:[#allocation3 + $0xf8] sm:$0xff] %vm1173, %v1140
      %v1206 = vld [vmem:[%s337 + $0x2] sm:$0xff]
      %v1207 = vld [vmem:[%s337 + $0xa] sm:$0xff]
      %v1208 = vld [vmem:[%s337 + $0x1a] sm:$0xff]
      %v1209 = vld [vmem:[%s337 + $0x22] sm:$0xff]
      %v1210 = vld [vmem:[%s337 + $0x32] sm:$0xff]
      %v1211 = vld [vmem:[%s337 + $0x3a] sm:$0xff]
      %v1212 = vld [vmem:[%s337 + $0x4a] sm:$0xff]
      %v1213 = vld [vmem:[%s337 + $0x52] sm:$0xff]
      %v1214 = vld [vmem:[%s337 + $0x62] sm:$0xff]
      %v1215 = vld [vmem:[%s337 + $0x6a] sm:$0xff]
      %v1216 = vld [vmem:[%s337 + $0x7a] sm:$0xff]
      %v1217 = vld [vmem:[%s337 + $0x82] sm:$0xff]
      %v1218 = vld [vmem:[%s337 + $0x92] sm:$0xff]
      %v1219 = vld [vmem:[%s337 + $0x9a] sm:$0xff]
      %v1220 = vld [vmem:[%s337 + $0xaa] sm:$0xff]
      %v1221 = vld [vmem:[%s337 + $0xb2] sm:$0xff]
      %v1222 = vld [vmem:[%s337 + $0xc2] sm:$0xff]
      %v1223 = vld [vmem:[%s337 + $0xca] sm:$0xff]
      %v1224 = vld [vmem:[%s337 + $0xda] sm:$0xff]
      %v1225 = vld [vmem:[%s337 + $0xe2] sm:$0xff]
      %v1226 = vld [vmem:[%s337 + $0xf2] sm:$0xff]
      %v1227 = vld [vmem:[%s337 + $0xfa] sm:$0xff]
      %v1228 = vld [vmem:[%s337 + $0x10a] sm:$0xff]
      %v1229 = vld [vmem:[%s337 + $0x112] sm:$0xff]
      %v1230 = vld [vmem:[%s337 + $0x122] sm:$0xff]
      %v1231 = vld [vmem:[%s337 + $0x12a] sm:$0xff]
      %v1232 = vld [vmem:[%s337 + $0x13a] sm:$0xff]
      %v1233 = vld [vmem:[%s337 + $0x142] sm:$0xff]
      %v1234 = vld [vmem:[%s337 + $0x152] sm:$0xff]
      %v1235 = vld [vmem:[%s337 + $0x15a] sm:$0xff]
      %v1236 = vld [vmem:[%s337 + $0x16a] sm:$0xff]
      %v1237 = vld [vmem:[%s337 + $0x172] sm:$0xff]
      %1270 = vrot.lane.b32.xlu0 %v1206, 20
      %v1271 = vpop.permute.xlu0 %1270
      %1272 = vrot.lane.b32.xlu0 %v1207, 20
      %v1273 = vpop.permute.xlu0 %1272
      %1274 = vrot.lane.b32.xlu0 %v1208, 20
      %v1275 = vpop.permute.xlu0 %1274
      %1276 = vrot.lane.b32.xlu0 %v1209, 20
      %v1277 = vpop.permute.xlu0 %1276
      %1278 = vrot.lane.b32.xlu0 %v1210, 20
      %v1279 = vpop.permute.xlu0 %1278
      %1280 = vrot.lane.b32.xlu0 %v1211, 20
      %v1281 = vpop.permute.xlu0 %1280
      %1282 = vrot.lane.b32.xlu0 %v1212, 20
      %v1283 = vpop.permute.xlu0 %1282
      %1284 = vrot.lane.b32.xlu0 %v1213, 20
      %v1285 = vpop.permute.xlu0 %1284
      %1286 = vrot.lane.b32.xlu0 %v1214, 20
      %v1287 = vpop.permute.xlu0 %1286
      %1288 = vrot.lane.b32.xlu0 %v1215, 20
      %v1289 = vpop.permute.xlu0 %1288
      %1290 = vrot.lane.b32.xlu0 %v1216, 20
      %v1291 = vpop.permute.xlu0 %1290
      %1292 = vrot.lane.b32.xlu0 %v1217, 20
      %v1293 = vpop.permute.xlu0 %1292
      %1294 = vrot.lane.b32.xlu0 %v1218, 20
      %v1295 = vpop.permute.xlu0 %1294
      %1296 = vrot.lane.b32.xlu0 %v1219, 20
      %v1297 = vpop.permute.xlu0 %1296
      %1298 = vrot.lane.b32.xlu0 %v1220, 20
      %v1299 = vpop.permute.xlu0 %1298
      %1300 = vrot.lane.b32.xlu0 %v1221, 20
      %v1301 = vpop.permute.xlu0 %1300
      %1302 = vrot.lane.b32.xlu0 %v1222, 20
      %v1303 = vpop.permute.xlu0 %1302
      %1304 = vrot.lane.b32.xlu0 %v1223, 20
      %v1305 = vpop.permute.xlu0 %1304
      %1306 = vrot.lane.b32.xlu0 %v1224, 20
      %v1307 = vpop.permute.xlu0 %1306
      %1308 = vrot.lane.b32.xlu0 %v1225, 20
      %v1309 = vpop.permute.xlu0 %1308
      %1310 = vrot.lane.b32.xlu0 %v1226, 20
      %v1311 = vpop.permute.xlu0 %1310
      %1312 = vrot.lane.b32.xlu0 %v1227, 20
      %v1313 = vpop.permute.xlu0 %1312
      %1314 = vrot.lane.b32.xlu0 %v1228, 20
      %v1315 = vpop.permute.xlu0 %1314
      %1316 = vrot.lane.b32.xlu0 %v1229, 20
      %v1317 = vpop.permute.xlu0 %1316
      %1318 = vrot.lane.b32.xlu0 %v1230, 20
      %v1319 = vpop.permute.xlu0 %1318
      %1320 = vrot.lane.b32.xlu0 %v1231, 20
      %v1321 = vpop.permute.xlu0 %1320
      %1322 = vrot.lane.b32.xlu0 %v1232, 20
      %v1323 = vpop.permute.xlu0 %1322
      %1324 = vrot.lane.b32.xlu0 %v1233, 20
      %v1325 = vpop.permute.xlu0 %1324
      %1326 = vrot.lane.b32.xlu0 %v1234, 20
      %v1327 = vpop.permute.xlu0 %1326
      %1328 = vrot.lane.b32.xlu0 %v1235, 20
      %v1329 = vpop.permute.xlu0 %1328
      %1330 = vrot.lane.b32.xlu0 %v1236, 20
      %v1331 = vpop.permute.xlu0 %1330
      %1332 = vrot.lane.b32.xlu0 %v1237, 20
      %v1333 = vpop.permute.xlu0 %1332
      %vm1366 = vcmask 195744
      %1367 = vst.msk [vmem:[#allocation3] sm:$0xff] %vm1366, %v1271
      %1368 = vst.msk [vmem:[#allocation3 + $0x8] sm:$0xff] %vm1366, %v1273
      %1369 = vst.msk [vmem:[#allocation3 + $0x10] sm:$0xff] %vm1366, %v1275
      %1370 = vst.msk [vmem:[#allocation3 + $0x18] sm:$0xff] %vm1366, %v1277
      %1371 = vst.msk [vmem:[#allocation3 + $0x20] sm:$0xff] %vm1366, %v1279
      %1372 = vst.msk [vmem:[#allocation3 + $0x28] sm:$0xff] %vm1366, %v1281
      %1373 = vst.msk [vmem:[#allocation3 + $0x30] sm:$0xff] %vm1366, %v1283
      %1374 = vst.msk [vmem:[#allocation3 + $0x38] sm:$0xff] %vm1366, %v1285
      %1375 = vst.msk [vmem:[#allocation3 + $0x40] sm:$0xff] %vm1366, %v1287
      %1376 = vst.msk [vmem:[#allocation3 + $0x48] sm:$0xff] %vm1366, %v1289
      %1377 = vst.msk [vmem:[#allocation3 + $0x50] sm:$0xff] %vm1366, %v1291
      %1378 = vst.msk [vmem:[#allocation3 + $0x58] sm:$0xff] %vm1366, %v1293
      %1379 = vst.msk [vmem:[#allocation3 + $0x60] sm:$0xff] %vm1366, %v1295
      %1380 = vst.msk [vmem:[#allocation3 + $0x68] sm:$0xff] %vm1366, %v1297
      %1381 = vst.msk [vmem:[#allocation3 + $0x70] sm:$0xff] %vm1366, %v1299
      %1382 = vst.msk [vmem:[#allocation3 + $0x78] sm:$0xff] %vm1366, %v1301
      %1383 = vst.msk [vmem:[#allocation3 + $0x80] sm:$0xff] %vm1366, %v1303
      %1384 = vst.msk [vmem:[#allocation3 + $0x88] sm:$0xff] %vm1366, %v1305
      %1385 = vst.msk [vmem:[#allocation3 + $0x90] sm:$0xff] %vm1366, %v1307
      %1386 = vst.msk [vmem:[#allocation3 + $0x98] sm:$0xff] %vm1366, %v1309
      %1387 = vst.msk [vmem:[#allocation3 + $0xa0] sm:$0xff] %vm1366, %v1311
      %1388 = vst.msk [vmem:[#allocation3 + $0xa8] sm:$0xff] %vm1366, %v1313
      %1389 = vst.msk [vmem:[#allocation3 + $0xb0] sm:$0xff] %vm1366, %v1315
      %1390 = vst.msk [vmem:[#allocation3 + $0xb8] sm:$0xff] %vm1366, %v1317
      %1391 = vst.msk [vmem:[#allocation3 + $0xc0] sm:$0xff] %vm1366, %v1319
      %1392 = vst.msk [vmem:[#allocation3 + $0xc8] sm:$0xff] %vm1366, %v1321
      %1393 = vst.msk [vmem:[#allocation3 + $0xd0] sm:$0xff] %vm1366, %v1323
      %1394 = vst.msk [vmem:[#allocation3 + $0xd8] sm:$0xff] %vm1366, %v1325
      %1395 = vst.msk [vmem:[#allocation3 + $0xe0] sm:$0xff] %vm1366, %v1327
      %1396 = vst.msk [vmem:[#allocation3 + $0xe8] sm:$0xff] %vm1366, %v1329
      %1397 = vst.msk [vmem:[#allocation3 + $0xf0] sm:$0xff] %vm1366, %v1331
      %1398 = vst.msk [vmem:[#allocation3 + $0xf8] sm:$0xff] %vm1366, %v1333
      %s1399 = scalar_lea.vmem [#allocation2], 48
      %v1400 = vld [vmem:[%s1399] sm:$0xff]
      %v1401 = vld [vmem:[%s1399 + $0x8] sm:$0xff]
      %v1402 = vld [vmem:[%s1399 + $0x18] sm:$0xff]
      %v1403 = vld [vmem:[%s1399 + $0x20] sm:$0xff]
      %v1404 = vld [vmem:[%s1399 + $0x30] sm:$0xff]
      %v1405 = vld [vmem:[%s1399 + $0x38] sm:$0xff]
      %v1406 = vld [vmem:[%s1399 + $0x48] sm:$0xff]
      %v1407 = vld [vmem:[%s1399 + $0x50] sm:$0xff]
      %v1408 = vld [vmem:[%s1399 + $0x60] sm:$0xff]
      %v1409 = vld [vmem:[%s1399 + $0x68] sm:$0xff]
      %v1410 = vld [vmem:[%s1399 + $0x78] sm:$0xff]
      %v1411 = vld [vmem:[%s1399 + $0x80] sm:$0xff]
      %v1412 = vld [vmem:[%s1399 + $0x90] sm:$0xff]
      %v1413 = vld [vmem:[%s1399 + $0x98] sm:$0xff]
      %v1414 = vld [vmem:[%s1399 + $0xa8] sm:$0xff]
      %v1415 = vld [vmem:[%s1399 + $0xb0] sm:$0xff]
      %v1416 = vld [vmem:[%s1399 + $0xc0] sm:$0xff]
      %v1417 = vld [vmem:[%s1399 + $0xc8] sm:$0xff]
      %v1418 = vld [vmem:[%s1399 + $0xd8] sm:$0xff]
      %v1419 = vld [vmem:[%s1399 + $0xe0] sm:$0xff]
      %v1420 = vld [vmem:[%s1399 + $0xf0] sm:$0xff]
      %v1421 = vld [vmem:[%s1399 + $0xf8] sm:$0xff]
      %v1422 = vld [vmem:[%s1399 + $0x108] sm:$0xff]
      %v1423 = vld [vmem:[%s1399 + $0x110] sm:$0xff]
      %v1424 = vld [vmem:[%s1399 + $0x120] sm:$0xff]
      %v1425 = vld [vmem:[%s1399 + $0x128] sm:$0xff]
      %v1426 = vld [vmem:[%s1399 + $0x138] sm:$0xff]
      %v1427 = vld [vmem:[%s1399 + $0x140] sm:$0xff]
      %v1428 = vld [vmem:[%s1399 + $0x150] sm:$0xff]
      %v1429 = vld [vmem:[%s1399 + $0x158] sm:$0xff]
      %v1430 = vld [vmem:[%s1399 + $0x168] sm:$0xff]
      %v1431 = vld [vmem:[%s1399 + $0x170] sm:$0xff]
      %1464 = vrot.lane.b32.xlu0 %v1400, 24
      %v1465 = vpop.permute.xlu0 %1464
      %1466 = vrot.lane.b32.xlu0 %v1401, 24
      %v1467 = vpop.permute.xlu0 %1466
      %1468 = vrot.lane.b32.xlu0 %v1402, 24
      %v1469 = vpop.permute.xlu0 %1468
      %1470 = vrot.lane.b32.xlu0 %v1403, 24
      %v1471 = vpop.permute.xlu0 %1470
      %1472 = vrot.lane.b32.xlu0 %v1404, 24
      %v1473 = vpop.permute.xlu0 %1472
      %1474 = vrot.lane.b32.xlu0 %v1405, 24
      %v1475 = vpop.permute.xlu0 %1474
      %1476 = vrot.lane.b32.xlu0 %v1406, 24
      %v1477 = vpop.permute.xlu0 %1476
      %1478 = vrot.lane.b32.xlu0 %v1407, 24
      %v1479 = vpop.permute.xlu0 %1478
      %1480 = vrot.lane.b32.xlu0 %v1408, 24
      %v1481 = vpop.permute.xlu0 %1480
      %1482 = vrot.lane.b32.xlu0 %v1409, 24
      %v1483 = vpop.permute.xlu0 %1482
      %1484 = vrot.lane.b32.xlu0 %v1410, 24
      %v1485 = vpop.permute.xlu0 %1484
      %1486 = vrot.lane.b32.xlu0 %v1411, 24
      %v1487 = vpop.permute.xlu0 %1486
      %1488 = vrot.lane.b32.xlu0 %v1412, 24
      %v1489 = vpop.permute.xlu0 %1488
      %1490 = vrot.lane.b32.xlu0 %v1413, 24
      %v1491 = vpop.permute.xlu0 %1490
      %1492 = vrot.lane.b32.xlu0 %v1414, 24
      %v1493 = vpop.permute.xlu0 %1492
      %1494 = vrot.lane.b32.xlu0 %v1415, 24
      %v1495 = vpop.permute.xlu0 %1494
      %1496 = vrot.lane.b32.xlu0 %v1416, 24
      %v1497 = vpop.permute.xlu0 %1496
      %1498 = vrot.lane.b32.xlu0 %v1417, 24
      %v1499 = vpop.permute.xlu0 %1498
      %1500 = vrot.lane.b32.xlu0 %v1418, 24
      %v1501 = vpop.permute.xlu0 %1500
      %1502 = vrot.lane.b32.xlu0 %v1419, 24
      %v1503 = vpop.permute.xlu0 %1502
      %1504 = vrot.lane.b32.xlu0 %v1420, 24
      %v1505 = vpop.permute.xlu0 %1504
      %1506 = vrot.lane.b32.xlu0 %v1421, 24
      %v1507 = vpop.permute.xlu0 %1506
      %1508 = vrot.lane.b32.xlu0 %v1422, 24
      %v1509 = vpop.permute.xlu0 %1508
      %1510 = vrot.lane.b32.xlu0 %v1423, 24
      %v1511 = vpop.permute.xlu0 %1510
      %1512 = vrot.lane.b32.xlu0 %v1424, 24
      %v1513 = vpop.permute.xlu0 %1512
      %1514 = vrot.lane.b32.xlu0 %v1425, 24
      %v1515 = vpop.permute.xlu0 %1514
      %1516 = vrot.lane.b32.xlu0 %v1426, 24
      %v1517 = vpop.permute.xlu0 %1516
      %1518 = vrot.lane.b32.xlu0 %v1427, 24
      %v1519 = vpop.permute.xlu0 %1518
      %1520 = vrot.lane.b32.xlu0 %v1428, 24
      %v1521 = vpop.permute.xlu0 %1520
      %1522 = vrot.lane.b32.xlu0 %v1429, 24
      %v1523 = vpop.permute.xlu0 %1522
      %1524 = vrot.lane.b32.xlu0 %v1430, 24
      %v1525 = vpop.permute.xlu0 %1524
      %1526 = vrot.lane.b32.xlu0 %v1431, 24
      %v1527 = vpop.permute.xlu0 %1526
      %vm1560 = vcmask 228544
      %1561 = vst.msk [vmem:[#allocation3] sm:$0xff] %vm1560, %v1465
      %1562 = vst.msk [vmem:[#allocation3 + $0x8] sm:$0xff] %vm1560, %v1467
      %1563 = vst.msk [vmem:[#allocation3 + $0x10] sm:$0xff] %vm1560, %v1469
      %1564 = vst.msk [vmem:[#allocation3 + $0x18] sm:$0xff] %vm1560, %v1471
      %1565 = vst.msk [vmem:[#allocation3 + $0x20] sm:$0xff] %vm1560, %v1473
      %1566 = vst.msk [vmem:[#allocation3 + $0x28] sm:$0xff] %vm1560, %v1475
      %1567 = vst.msk [vmem:[#allocation3 + $0x30] sm:$0xff] %vm1560, %v1477
      %1568 = vst.msk [vmem:[#allocation3 + $0x38] sm:$0xff] %vm1560, %v1479
      %1569 = vst.msk [vmem:[#allocation3 + $0x40] sm:$0xff] %vm1560, %v1481
      %1570 = vst.msk [vmem:[#allocation3 + $0x48] sm:$0xff] %vm1560, %v1483
      %1571 = vst.msk [vmem:[#allocation3 + $0x50] sm:$0xff] %vm1560, %v1485
      %1572 = vst.msk [vmem:[#allocation3 + $0x58] sm:$0xff] %vm1560, %v1487
      %1573 = vst.msk [vmem:[#allocation3 + $0x60] sm:$0xff] %vm1560, %v1489
      %1574 = vst.msk [vmem:[#allocation3 + $0x68] sm:$0xff] %vm1560, %v1491
      %1575 = vst.msk [vmem:[#allocation3 + $0x70] sm:$0xff] %vm1560, %v1493
      %1576 = vst.msk [vmem:[#allocation3 + $0x78] sm:$0xff] %vm1560, %v1495
      %1577 = vst.msk [vmem:[#allocation3 + $0x80] sm:$0xff] %vm1560, %v1497
      %1578 = vst.msk [vmem:[#allocation3 + $0x88] sm:$0xff] %vm1560, %v1499
      %1579 = vst.msk [vmem:[#allocation3 + $0x90] sm:$0xff] %vm1560, %v1501
      %1580 = vst.msk [vmem:[#allocation3 + $0x98] sm:$0xff] %vm1560, %v1503
      %1581 = vst.msk [vmem:[#allocation3 + $0xa0] sm:$0xff] %vm1560, %v1505
      %1582 = vst.msk [vmem:[#allocation3 + $0xa8] sm:$0xff] %vm1560, %v1507
      %1583 = vst.msk [vmem:[#allocation3 + $0xb0] sm:$0xff] %vm1560, %v1509
      %1584 = vst.msk [vmem:[#allocation3 + $0xb8] sm:$0xff] %vm1560, %v1511
      %1585 = vst.msk [vmem:[#allocation3 + $0xc0] sm:$0xff] %vm1560, %v1513
      %1586 = vst.msk [vmem:[#allocation3 + $0xc8] sm:$0xff] %vm1560, %v1515
      %1587 = vst.msk [vmem:[#allocation3 + $0xd0] sm:$0xff] %vm1560, %v1517
      %1588 = vst.msk [vmem:[#allocation3 + $0xd8] sm:$0xff] %vm1560, %v1519
      %1589 = vst.msk [vmem:[#allocation3 + $0xe0] sm:$0xff] %vm1560, %v1521
      %1590 = vst.msk [vmem:[#allocation3 + $0xe8] sm:$0xff] %vm1560, %v1523
      %1591 = vst.msk [vmem:[#allocation3 + $0xf0] sm:$0xff] %vm1560, %v1525
      %1592 = vst.msk [vmem:[#allocation3 + $0xf8] sm:$0xff] %vm1560, %v1527
      %v1593 = vld [vmem:[%s1399 + $0x1] sm:$0xff]
      %v1594 = vld [vmem:[%s1399 + $0x9] sm:$0xff]
      %v1595 = vld [vmem:[%s1399 + $0x19] sm:$0xff]
      %v1596 = vld [vmem:[%s1399 + $0x21] sm:$0xff]
      %v1597 = vld [vmem:[%s1399 + $0x31] sm:$0xff]
      %v1598 = vld [vmem:[%s1399 + $0x39] sm:$0xff]
      %v1599 = vld [vmem:[%s1399 + $0x49] sm:$0xff]
      %v1600 = vld [vmem:[%s1399 + $0x51] sm:$0xff]
      %v1601 = vld [vmem:[%s1399 + $0x61] sm:$0xff]
      %v1602 = vld [vmem:[%s1399 + $0x69] sm:$0xff]
      %v1603 = vld [vmem:[%s1399 + $0x79] sm:$0xff]
      %v1604 = vld [vmem:[%s1399 + $0x81] sm:$0xff]
      %v1605 = vld [vmem:[%s1399 + $0x91] sm:$0xff]
      %v1606 = vld [vmem:[%s1399 + $0x99] sm:$0xff]
      %v1607 = vld [vmem:[%s1399 + $0xa9] sm:$0xff]
      %v1608 = vld [vmem:[%s1399 + $0xb1] sm:$0xff]
      %v1609 = vld [vmem:[%s1399 + $0xc1] sm:$0xff]
      %v1610 = vld [vmem:[%s1399 + $0xc9] sm:$0xff]
      %v1611 = vld [vmem:[%s1399 + $0xd9] sm:$0xff]
      %v1612 = vld [vmem:[%s1399 + $0xe1] sm:$0xff]
      %v1613 = vld [vmem:[%s1399 + $0xf1] sm:$0xff]
      %v1614 = vld [vmem:[%s1399 + $0xf9] sm:$0xff]
      %v1615 = vld [vmem:[%s1399 + $0x109] sm:$0xff]
      %v1616 = vld [vmem:[%s1399 + $0x111] sm:$0xff]
      %v1617 = vld [vmem:[%s1399 + $0x121] sm:$0xff]
      %v1618 = vld [vmem:[%s1399 + $0x129] sm:$0xff]
      %v1619 = vld [vmem:[%s1399 + $0x139] sm:$0xff]
      %v1620 = vld [vmem:[%s1399 + $0x141] sm:$0xff]
      %v1621 = vld [vmem:[%s1399 + $0x151] sm:$0xff]
      %v1622 = vld [vmem:[%s1399 + $0x159] sm:$0xff]
      %v1623 = vld [vmem:[%s1399 + $0x169] sm:$0xff]
      %v1624 = vld [vmem:[%s1399 + $0x171] sm:$0xff]
      %1657 = vrot.lane.b32.xlu0 %v1593, 28
      %v1658 = vpop.permute.xlu0 %1657
      %1659 = vrot.lane.b32.xlu0 %v1594, 28
      %v1660 = vpop.permute.xlu0 %1659
      %1661 = vrot.lane.b32.xlu0 %v1595, 28
      %v1662 = vpop.permute.xlu0 %1661
      %1663 = vrot.lane.b32.xlu0 %v1596, 28
      %v1664 = vpop.permute.xlu0 %1663
      %1665 = vrot.lane.b32.xlu0 %v1597, 28
      %v1666 = vpop.permute.xlu0 %1665
      %1667 = vrot.lane.b32.xlu0 %v1598, 28
      %v1668 = vpop.permute.xlu0 %1667
      %1669 = vrot.lane.b32.xlu0 %v1599, 28
      %v1670 = vpop.permute.xlu0 %1669
      %1671 = vrot.lane.b32.xlu0 %v1600, 28
      %v1672 = vpop.permute.xlu0 %1671
      %1673 = vrot.lane.b32.xlu0 %v1601, 28
      %v1674 = vpop.permute.xlu0 %1673
      %1675 = vrot.lane.b32.xlu0 %v1602, 28
      %v1676 = vpop.permute.xlu0 %1675
      %1677 = vrot.lane.b32.xlu0 %v1603, 28
      %v1678 = vpop.permute.xlu0 %1677
      %1679 = vrot.lane.b32.xlu0 %v1604, 28
      %v1680 = vpop.permute.xlu0 %1679
      %1681 = vrot.lane.b32.xlu0 %v1605, 28
      %v1682 = vpop.permute.xlu0 %1681
      %1683 = vrot.lane.b32.xlu0 %v1606, 28
      %v1684 = vpop.permute.xlu0 %1683
      %1685 = vrot.lane.b32.xlu0 %v1607, 28
      %v1686 = vpop.permute.xlu0 %1685
      %1687 = vrot.lane.b32.xlu0 %v1608, 28
      %v1688 = vpop.permute.xlu0 %1687
      %1689 = vrot.lane.b32.xlu0 %v1609, 28
      %v1690 = vpop.permute.xlu0 %1689
      %1691 = vrot.lane.b32.xlu0 %v1610, 28
      %v1692 = vpop.permute.xlu0 %1691
      %1693 = vrot.lane.b32.xlu0 %v1611, 28
      %v1694 = vpop.permute.xlu0 %1693
      %1695 = vrot.lane.b32.xlu0 %v1612, 28
      %v1696 = vpop.permute.xlu0 %1695
      %1697 = vrot.lane.b32.xlu0 %v1613, 28
      %v1698 = vpop.permute.xlu0 %1697
      %1699 = vrot.lane.b32.xlu0 %v1614, 28
      %v1700 = vpop.permute.xlu0 %1699
      %1701 = vrot.lane.b32.xlu0 %v1615, 28
      %v1702 = vpop.permute.xlu0 %1701
      %1703 = vrot.lane.b32.xlu0 %v1616, 28
      %v1704 = vpop.permute.xlu0 %1703
      %1705 = vrot.lane.b32.xlu0 %v1617, 28
      %v1706 = vpop.permute.xlu0 %1705
      %1707 = vrot.lane.b32.xlu0 %v1618, 28
      %v1708 = vpop.permute.xlu0 %1707
      %1709 = vrot.lane.b32.xlu0 %v1619, 28
      %v1710 = vpop.permute.xlu0 %1709
      %1711 = vrot.lane.b32.xlu0 %v1620, 28
      %v1712 = vpop.permute.xlu0 %1711
      %1713 = vrot.lane.b32.xlu0 %v1621, 28
      %v1714 = vpop.permute.xlu0 %1713
      %1715 = vrot.lane.b32.xlu0 %v1622, 28
      %v1716 = vpop.permute.xlu0 %1715
      %1717 = vrot.lane.b32.xlu0 %v1623, 28
      %v1718 = vpop.permute.xlu0 %1717
      %1719 = vrot.lane.b32.xlu0 %v1624, 28
      %v1720 = vpop.permute.xlu0 %1719
      %vm1753 = vcmask 261344
      %1754 = vst.msk [vmem:[#allocation3] sm:$0xff] %vm1753, %v1658
      %1755 = vst.msk [vmem:[#allocation3 + $0x8] sm:$0xff] %vm1753, %v1660
      %1756 = vst.msk [vmem:[#allocation3 + $0x10] sm:$0xff] %vm1753, %v1662
      %1757 = vst.msk [vmem:[#allocation3 + $0x18] sm:$0xff] %vm1753, %v1664
      %1758 = vst.msk [vmem:[#allocation3 + $0x20] sm:$0xff] %vm1753, %v1666
      %1759 = vst.msk [vmem:[#allocation3 + $0x28] sm:$0xff] %vm1753, %v1668
      %1760 = vst.msk [vmem:[#allocation3 + $0x30] sm:$0xff] %vm1753, %v1670
      %1761 = vst.msk [vmem:[#allocation3 + $0x38] sm:$0xff] %vm1753, %v1672
      %1762 = vst.msk [vmem:[#allocation3 + $0x40] sm:$0xff] %vm1753, %v1674
      %1763 = vst.msk [vmem:[#allocation3 + $0x48] sm:$0xff] %vm1753, %v1676
      %1764 = vst.msk [vmem:[#allocation3 + $0x50] sm:$0xff] %vm1753, %v1678
      %1765 = vst.msk [vmem:[#allocation3 + $0x58] sm:$0xff] %vm1753, %v1680
      %1766 = vst.msk [vmem:[#allocation3 + $0x60] sm:$0xff] %vm1753, %v1682
      %1767 = vst.msk [vmem:[#allocation3 + $0x68] sm:$0xff] %vm1753, %v1684
      %1768 = vst.msk [vmem:[#allocation3 + $0x70] sm:$0xff] %vm1753, %v1686
      %1769 = vst.msk [vmem:[#allocation3 + $0x78] sm:$0xff] %vm1753, %v1688
      %1770 = vst.msk [vmem:[#allocation3 + $0x80] sm:$0xff] %vm1753, %v1690
      %1771 = vst.msk [vmem:[#allocation3 + $0x88] sm:$0xff] %vm1753, %v1692
      %1772 = vst.msk [vmem:[#allocation3 + $0x90] sm:$0xff] %vm1753, %v1694
      %1773 = vst.msk [vmem:[#allocation3 + $0x98] sm:$0xff] %vm1753, %v1696
      %1774 = vst.msk [vmem:[#allocation3 + $0xa0] sm:$0xff] %vm1753, %v1698
      %1775 = vst.msk [vmem:[#allocation3 + $0xa8] sm:$0xff] %vm1753, %v1700
      %1776 = vst.msk [vmem:[#allocation3 + $0xb0] sm:$0xff] %vm1753, %v1702
      %1777 = vst.msk [vmem:[#allocation3 + $0xb8] sm:$0xff] %vm1753, %v1704
      %1778 = vst.msk [vmem:[#allocation3 + $0xc0] sm:$0xff] %vm1753, %v1706
      %1779 = vst.msk [vmem:[#allocation3 + $0xc8] sm:$0xff] %vm1753, %v1708
      %1780 = vst.msk [vmem:[#allocation3 + $0xd0] sm:$0xff] %vm1753, %v1710
      %1781 = vst.msk [vmem:[#allocation3 + $0xd8] sm:$0xff] %vm1753, %v1712
      %1782 = vst.msk [vmem:[#allocation3 + $0xe0] sm:$0xff] %vm1753, %v1714
      %1783 = vst.msk [vmem:[#allocation3 + $0xe8] sm:$0xff] %vm1753, %v1716
      %1784 = vst.msk [vmem:[#allocation3 + $0xf0] sm:$0xff] %vm1753, %v1718
      %1785 = vst.msk [vmem:[#allocation3 + $0xf8] sm:$0xff] %vm1753, %v1720
      %v1786 = vld [vmem:[%s1399 + $0x2] sm:$0xff]
      %v1787 = vld [vmem:[%s1399 + $0xa] sm:$0xff]
      %v1788 = vld [vmem:[%s1399 + $0x1a] sm:$0xff]
      %v1789 = vld [vmem:[%s1399 + $0x22] sm:$0xff]
      %v1790 = vld [vmem:[%s1399 + $0x32] sm:$0xff]
      %v1791 = vld [vmem:[%s1399 + $0x3a] sm:$0xff]
      %v1792 = vld [vmem:[%s1399 + $0x4a] sm:$0xff]
      %v1793 = vld [vmem:[%s1399 + $0x52] sm:$0xff]
      %v1794 = vld [vmem:[%s1399 + $0x62] sm:$0xff]
      %v1795 = vld [vmem:[%s1399 + $0x6a] sm:$0xff]
      %v1796 = vld [vmem:[%s1399 + $0x7a] sm:$0xff]
      %v1797 = vld [vmem:[%s1399 + $0x82] sm:$0xff]
      %v1798 = vld [vmem:[%s1399 + $0x92] sm:$0xff]
      %v1799 = vld [vmem:[%s1399 + $0x9a] sm:$0xff]
      %v1800 = vld [vmem:[%s1399 + $0xaa] sm:$0xff]
      %v1801 = vld [vmem:[%s1399 + $0xb2] sm:$0xff]
      %v1802 = vld [vmem:[%s1399 + $0xc2] sm:$0xff]
      %v1803 = vld [vmem:[%s1399 + $0xca] sm:$0xff]
      %v1804 = vld [vmem:[%s1399 + $0xda] sm:$0xff]
      %v1805 = vld [vmem:[%s1399 + $0xe2] sm:$0xff]
      %v1806 = vld [vmem:[%s1399 + $0xf2] sm:$0xff]
      %v1807 = vld [vmem:[%s1399 + $0xfa] sm:$0xff]
      %v1808 = vld [vmem:[%s1399 + $0x10a] sm:$0xff]
      %v1809 = vld [vmem:[%s1399 + $0x112] sm:$0xff]
      %v1810 = vld [vmem:[%s1399 + $0x122] sm:$0xff]
      %v1811 = vld [vmem:[%s1399 + $0x12a] sm:$0xff]
      %v1812 = vld [vmem:[%s1399 + $0x13a] sm:$0xff]
      %v1813 = vld [vmem:[%s1399 + $0x142] sm:$0xff]
      %v1814 = vld [vmem:[%s1399 + $0x152] sm:$0xff]
      %v1815 = vld [vmem:[%s1399 + $0x15a] sm:$0xff]
      %v1816 = vld [vmem:[%s1399 + $0x16a] sm:$0xff]
      %v1817 = vld [vmem:[%s1399 + $0x172] sm:$0xff]
      %1850 = vrot.lane.b32.xlu0 %v1786, 32
      %v1851 = vpop.permute.xlu0 %1850
      %1852 = vrot.lane.b32.xlu0 %v1787, 32
      %v1853 = vpop.permute.xlu0 %1852
      %1854 = vrot.lane.b32.xlu0 %v1788, 32
      %v1855 = vpop.permute.xlu0 %1854
      %1856 = vrot.lane.b32.xlu0 %v1789, 32
      %v1857 = vpop.permute.xlu0 %1856
      %1858 = vrot.lane.b32.xlu0 %v1790, 32
      %v1859 = vpop.permute.xlu0 %1858
      %1860 = vrot.lane.b32.xlu0 %v1791, 32
      %v1861 = vpop.permute.xlu0 %1860
      %1862 = vrot.lane.b32.xlu0 %v1792, 32
      %v1863 = vpop.permute.xlu0 %1862
      %1864 = vrot.lane.b32.xlu0 %v1793, 32
      %v1865 = vpop.permute.xlu0 %1864
      %1866 = vrot.lane.b32.xlu0 %v1794, 32
      %v1867 = vpop.permute.xlu0 %1866
      %1868 = vrot.lane.b32.xlu0 %v1795, 32
      %v1869 = vpop.permute.xlu0 %1868
      %1870 = vrot.lane.b32.xlu0 %v1796, 32
      %v1871 = vpop.permute.xlu0 %1870
      %1872 = vrot.lane.b32.xlu0 %v1797, 32
      %v1873 = vpop.permute.xlu0 %1872
      %1874 = vrot.lane.b32.xlu0 %v1798, 32
      %v1875 = vpop.permute.xlu0 %1874
      %1876 = vrot.lane.b32.xlu0 %v1799, 32
      %v1877 = vpop.permute.xlu0 %1876
      %1878 = vrot.lane.b32.xlu0 %v1800, 32
      %v1879 = vpop.permute.xlu0 %1878
      %1880 = vrot.lane.b32.xlu0 %v1801, 32
      %v1881 = vpop.permute.xlu0 %1880
      %1882 = vrot.lane.b32.xlu0 %v1802, 32
      %v1883 = vpop.permute.xlu0 %1882
      %1884 = vrot.lane.b32.xlu0 %v1803, 32
      %v1885 = vpop.permute.xlu0 %1884
      %1886 = vrot.lane.b32.xlu0 %v1804, 32
      %v1887 = vpop.permute.xlu0 %1886
      %1888 = vrot.lane.b32.xlu0 %v1805, 32
      %v1889 = vpop.permute.xlu0 %1888
      %1890 = vrot.lane.b32.xlu0 %v1806, 32
      %v1891 = vpop.permute.xlu0 %1890
      %1892 = vrot.lane.b32.xlu0 %v1807, 32
      %v1893 = vpop.permute.xlu0 %1892
      %1894 = vrot.lane.b32.xlu0 %v1808, 32
      %v1895 = vpop.permute.xlu0 %1894
      %1896 = vrot.lane.b32.xlu0 %v1809, 32
      %v1897 = vpop.permute.xlu0 %1896
      %1898 = vrot.lane.b32.xlu0 %v1810, 32
      %v1899 = vpop.permute.xlu0 %1898
      %1900 = vrot.lane.b32.xlu0 %v1811, 32
      %v1901 = vpop.permute.xlu0 %1900
      %1902 = vrot.lane.b32.xlu0 %v1812, 32
      %v1903 = vpop.permute.xlu0 %1902
      %1904 = vrot.lane.b32.xlu0 %v1813, 32
      %v1905 = vpop.permute.xlu0 %1904
      %1906 = vrot.lane.b32.xlu0 %v1814, 32
      %v1907 = vpop.permute.xlu0 %1906
      %1908 = vrot.lane.b32.xlu0 %v1815, 32
      %v1909 = vpop.permute.xlu0 %1908
      %1910 = vrot.lane.b32.xlu0 %v1816, 32
      %v1911 = vpop.permute.xlu0 %1910
      %1912 = vrot.lane.b32.xlu0 %v1817, 32
      %v1913 = vpop.permute.xlu0 %1912
      %vm1946 = vcmask 294144
      %1947 = vst.msk [vmem:[#allocation3] sm:$0xff] %vm1946, %v1851
      %1948 = vst.msk [vmem:[#allocation3 + $0x8] sm:$0xff] %vm1946, %v1853
      %1949 = vst.msk [vmem:[#allocation3 + $0x10] sm:$0xff] %vm1946, %v1855
      %1950 = vst.msk [vmem:[#allocation3 + $0x18] sm:$0xff] %vm1946, %v1857
      %1951 = vst.msk [vmem:[#allocation3 + $0x20] sm:$0xff] %vm1946, %v1859
      %1952 = vst.msk [vmem:[#allocation3 + $0x28] sm:$0xff] %vm1946, %v1861
      %1953 = vst.msk [vmem:[#allocation3 + $0x30] sm:$0xff] %vm1946, %v1863
      %1954 = vst.msk [vmem:[#allocation3 + $0x38] sm:$0xff] %vm1946, %v1865
      %1955 = vst.msk [vmem:[#allocation3 + $0x40] sm:$0xff] %vm1946, %v1867
      %1956 = vst.msk [vmem:[#allocation3 + $0x48] sm:$0xff] %vm1946, %v1869
      %1957 = vst.msk [vmem:[#allocation3 + $0x50] sm:$0xff] %vm1946, %v1871
      %1958 = vst.msk [vmem:[#allocation3 + $0x58] sm:$0xff] %vm1946, %v1873
      %1959 = vst.msk [vmem:[#allocation3 + $0x60] sm:$0xff] %vm1946, %v1875
      %1960 = vst.msk [vmem:[#allocation3 + $0x68] sm:$0xff] %vm1946, %v1877
      %1961 = vst.msk [vmem:[#allocation3 + $0x70] sm:$0xff] %vm1946, %v1879
      %1962 = vst.msk [vmem:[#allocation3 + $0x78] sm:$0xff] %vm1946, %v1881
      %1963 = vst.msk [vmem:[#allocation3 + $0x80] sm:$0xff] %vm1946, %v1883
      %1964 = vst.msk [vmem:[#allocation3 + $0x88] sm:$0xff] %vm1946, %v1885
      %1965 = vst.msk [vmem:[#allocation3 + $0x90] sm:$0xff] %vm1946, %v1887
      %1966 = vst.msk [vmem:[#allocation3 + $0x98] sm:$0xff] %vm1946, %v1889
      %1967 = vst.msk [vmem:[#allocation3 + $0xa0] sm:$0xff] %vm1946, %v1891
      %1968 = vst.msk [vmem:[#allocation3 + $0xa8] sm:$0xff] %vm1946, %v1893
      %1969 = vst.msk [vmem:[#allocation3 + $0xb0] sm:$0xff] %vm1946, %v1895
      %1970 = vst.msk [vmem:[#allocation3 + $0xb8] sm:$0xff] %vm1946, %v1897
      %1971 = vst.msk [vmem:[#allocation3 + $0xc0] sm:$0xff] %vm1946, %v1899
      %1972 = vst.msk [vmem:[#allocation3 + $0xc8] sm:$0xff] %vm1946, %v1901
      %1973 = vst.msk [vmem:[#allocation3 + $0xd0] sm:$0xff] %vm1946, %v1903
      %1974 = vst.msk [vmem:[#allocation3 + $0xd8] sm:$0xff] %vm1946, %v1905
      %1975 = vst.msk [vmem:[#allocation3 + $0xe0] sm:$0xff] %vm1946, %v1907
      %1976 = vst.msk [vmem:[#allocation3 + $0xe8] sm:$0xff] %vm1946, %v1909
      %1977 = vst.msk [vmem:[#allocation3 + $0xf0] sm:$0xff] %vm1946, %v1911
      %1978 = vst.msk [vmem:[#allocation3 + $0xf8] sm:$0xff] %vm1946, %v1913
      %v1979 = vld [vmem:[#allocation3] sm:$0xff]
      %v1980 = vld [vmem:[#allocation3 + $0x8] sm:$0xff]
      %v1981 = vld [vmem:[#allocation3 + $0x10] sm:$0xff]
      %v1982 = vld [vmem:[#allocation3 + $0x18] sm:$0xff]
      %v1983 = vld [vmem:[#allocation3 + $0x20] sm:$0xff]
      %v1984 = vld [vmem:[#allocation3 + $0x28] sm:$0xff]
      %v1985 = vld [vmem:[#allocation3 + $0x30] sm:$0xff]
      %v1986 = vld [vmem:[#allocation3 + $0x38] sm:$0xff]
      %v1987 = vld [vmem:[#allocation3 + $0x40] sm:$0xff]
      %v1988 = vld [vmem:[#allocation3 + $0x48] sm:$0xff]
      %v1989 = vld [vmem:[#allocation3 + $0x50] sm:$0xff]
      %v1990 = vld [vmem:[#allocation3 + $0x58] sm:$0xff]
      %v1991 = vld [vmem:[#allocation3 + $0x60] sm:$0xff]
      %v1992 = vld [vmem:[#allocation3 + $0x68] sm:$0xff]
      %v1993 = vld [vmem:[#allocation3 + $0x70] sm:$0xff]
      %v1994 = vld [vmem:[#allocation3 + $0x78] sm:$0xff]
      %v1995 = vld [vmem:[#allocation3 + $0x80] sm:$0xff]
      %v1996 = vld [vmem:[#allocation3 + $0x88] sm:$0xff]
      %v1997 = vld [vmem:[#allocation3 + $0x90] sm:$0xff]
      %v1998 = vld [vmem:[#allocation3 + $0x98] sm:$0xff]
      %v1999 = vld [vmem:[#allocation3 + $0xa0] sm:$0xff]
      %v2000 = vld [vmem:[#allocation3 + $0xa8] sm:$0xff]
      %v2001 = vld [vmem:[#allocation3 + $0xb0] sm:$0xff]
      %v2002 = vld [vmem:[#allocation3 + $0xb8] sm:$0xff]
      %v2003 = vld [vmem:[#allocation3 + $0xc0] sm:$0xff]
      %v2004 = vld [vmem:[#allocation3 + $0xc8] sm:$0xff]
      %v2005 = vld [vmem:[#allocation3 + $0xd0] sm:$0xff]
      %v2006 = vld [vmem:[#allocation3 + $0xd8] sm:$0xff]
      %v2007 = vld [vmem:[#allocation3 + $0xe0] sm:$0xff]
      %v2008 = vld [vmem:[#allocation3 + $0xe8] sm:$0xff]
      %v2009 = vld [vmem:[#allocation3 + $0xf0] sm:$0xff]
      %v2010 = vld [vmem:[#allocation3 + $0xf8] sm:$0xff]
      %v2011 = vpack.c.bf16 %v1980, %v1979
      %v2012 = vpack.c.bf16 %v1982, %v1981
      %v2013 = vpack.c.bf16 %v1984, %v1983
      %v2014 = vpack.c.bf16 %v1986, %v1985
      %v2015 = vpack.c.bf16 %v1988, %v1987
      %v2016 = vpack.c.bf16 %v1990, %v1989
      %v2017 = vpack.c.bf16 %v1992, %v1991
      %v2018 = vpack.c.bf16 %v1994, %v1993
      %v2019 = vpack.c.bf16 %v1996, %v1995
      %v2020 = vpack.c.bf16 %v1998, %v1997
      %v2021 = vpack.c.bf16 %v2000, %v1999
      %v2022 = vpack.c.bf16 %v2002, %v2001
      %v2023 = vpack.c.bf16 %v2004, %v2003
      %v2024 = vpack.c.bf16 %v2006, %v2005
      %v2025 = vpack.c.bf16 %v2008, %v2007
      %v2026 = vpack.c.bf16 %v2010, %v2009
      %v2027 = vld [vmem:[%s1] sm:$0xf]
      %v2028 = vld [vmem:[%s1 + $0x4] sm:$0xf]
      %v2029 = vld [vmem:[%s1 + $0x8] sm:$0xf]
      %v2030 = vld [vmem:[%s1 + $0xc] sm:$0xf]
      %v2031 = vld [vmem:[%s1 + $0x10] sm:$0x3]
      %v2037 = vunpack.c.l.b16 %v2027
      %v2038 = vunpack.c.l.b16 %v2028
      %v2039 = vunpack.c.l.b16 %v2029
      %v2040 = vunpack.c.l.b16 %v2030
      %v2041 = vunpack.c.l.b16 %v2031
      %v2042 = vpack.c.b16 %v2038, %v2037
      %v2043 = vpack.c.b16 %v2040, %v2039
      %v2044 = vpack.c.b16 %v2041, %v2041
      %vm2047 = vcmask 293888
      %v2049 = vsel %vm2047, %v2011, 0
      %v2052 = vsel %vm2047, %v2012, 0
      %v2055 = vsel %vm2047, %v2013, 0
      %v2058 = vsel %vm2047, %v2014, 0
      %v2061 = vsel %vm2047, %v2015, 0
      %v2064 = vsel %vm2047, %v2016, 0
      %v2067 = vsel %vm2047, %v2017, 0
      %v2070 = vsel %vm2047, %v2018, 0
      %v2073 = vsel %vm2047, %v2019, 0
      %v2076 = vsel %vm2047, %v2020, 0
      %v2079 = vsel %vm2047, %v2021, 0
      %v2082 = vsel %vm2047, %v2022, 0
      %v2085 = vsel %vm2047, %v2023, 0
      %v2088 = vsel %vm2047, %v2024, 0
      %v2091 = vsel %vm2047, %v2025, 0
      %v2094 = vsel %vm2047, %v2026, 0
      %vm2096 = vcmask 1041408
      %v2098 = vsel %vm2096, %v2044, 0
      %2100 = vmatprep.subr.bf16.mxu0 0
      %2101 = vmatpush1.bf16.msra.mxu0 %v2042
      %2102 = vmatprep.subr.bf16.mxu0 0
      %2103 = vmatpush1.bf16.msra.mxu0 %v2043
      %2104 = vmatprep.subr.bf16.mxu0 0
      %2105 = vmatpush1.bf16.msra.mxu0 %v2098
      %2106 = vmatprep.subr.bf16.mxu0 0
      %2107 = vmatpush1.bf16.msra.mxu0 0
      %2108 = vmatprep.subr.bf16.mxu0 0
      %2109 = vmatpush1.bf16.msra.mxu0 0
      %2110 = vmatprep.subr.bf16.mxu0 0
      %2111 = vmatpush1.bf16.msra.mxu0 0
      %2112 = vmatprep.subr.bf16.mxu0 0
      %2113 = vmatpush1.bf16.msra.mxu0 0
      %2114 = vmatprep.subr.bf16.mxu0 0
      %2115 = vmatpush1.bf16.msra.mxu0 0
      %2116 = vmatprep.subr.bf16.mxu0 0
      %2117 = vmatpush1.bf16.msra.mxu0 0
      %2118 = vmatprep.subr.bf16.mxu0 0
      %2119 = vmatpush1.bf16.msra.mxu0 0
      %2120 = vmatprep.subr.bf16.mxu0 0
      %2121 = vmatpush1.bf16.msra.mxu0 0
      %2122 = vmatprep.subr.bf16.mxu0 0
      %2123 = vmatpush1.bf16.msra.mxu0 0
      %2124 = vmatprep.subr.bf16.mxu0 0
      %2125 = vmatpush1.bf16.msra.mxu0 0
      %2126 = vmatprep.subr.bf16.mxu0 0
      %2127 = vmatpush1.bf16.msra.mxu0 0
      %2128 = vmatprep.subr.bf16.mxu0 0
      %2129 = vmatpush1.bf16.msra.mxu0 0
      %2130 = vmatprep.subr.bf16.mxu0 0
      %2131 = vmatpush1.bf16.msra.mxu0 0
      %2132 = vmatprep.mubr.bf16.mxu0 0
      %2133 = vmatmul.mubr.bf16.gmra.mrb[0].mxu0 %v2049
      %v2134 = vpop.f32.mrb[0].mxu0
      %v2135 = vadd.f32 0.0, %v2134
      %v2136 = vpop.f32.mrb[0].mxu0
      %v2137 = vpop.f32.mrb[0].mxu0
      %v2138 = vadd.f32 0.0, %v2137
      %v2139 = vpop.f32.mrb[0].mxu0
      %2140 = vmatprep.mubr.bf16.mxu0 0
      %2141 = vmatmul.mubr.bf16.gmra.mrb[0].mxu0 %v2052
      %v2142 = vpop.f32.mrb[0].mxu0
      %v2143 = vadd.f32 0.0, %v2142
      %v2144 = vpop.f32.mrb[0].mxu0
      %v2145 = vpop.f32.mrb[0].mxu0
      %v2146 = vadd.f32 0.0, %v2145
      %v2147 = vpop.f32.mrb[0].mxu0
      %2148 = vmatprep.mubr.bf16.mxu0 0
      %2149 = vmatmul.mubr.bf16.gmra.mrb[0].mxu0 %v2055
      %v2150 = vpop.f32.mrb[0].mxu0
      %v2151 = vadd.f32 0.0, %v2150
      %v2152 = vpop.f32.mrb[0].mxu0
      %v2153 = vpop.f32.mrb[0].mxu0
      %v2154 = vadd.f32 0.0, %v2153
      %v2155 = vpop.f32.mrb[0].mxu0
      %2156 = vmatprep.mubr.bf16.mxu0 0
      %2157 = vmatmul.mubr.bf16.gmra.mrb[0].mxu0 %v2058
      %v2158 = vpop.f32.mrb[0].mxu0
      %v2159 = vadd.f32 0.0, %v2158
      %v2160 = vpop.f32.mrb[0].mxu0
      %v2161 = vpop.f32.mrb[0].mxu0
      %v2162 = vadd.f32 0.0, %v2161
      %v2163 = vpop.f32.mrb[0].mxu0
      %2164 = vmatprep.mubr.bf16.mxu0 0
      %2165 = vmatmul.mubr.bf16.gmra.mrb[0].mxu0 %v2061
      %v2166 = vpop.f32.mrb[0].mxu0
      %v2167 = vadd.f32 0.0, %v2166
      %v2168 = vpop.f32.mrb[0].mxu0
      %v2169 = vpop.f32.mrb[0].mxu0
      %v2170 = vadd.f32 0.0, %v2169
      %v2171 = vpop.f32.mrb[0].mxu0
      %2172 = vmatprep.mubr.bf16.mxu0 0
      %2173 = vmatmul.mubr.bf16.gmra.mrb[0].mxu0 %v2064
      %v2174 = vpop.f32.mrb[0].mxu0
      %v2175 = vadd.f32 0.0, %v2174
      %v2176 = vpop.f32.mrb[0].mxu0
      %v2177 = vpop.f32.mrb[0].mxu0
      %v2178 = vadd.f32 0.0, %v2177
      %v2179 = vpop.f32.mrb[0].mxu0
      %2180 = vmatprep.mubr.bf16.mxu0 0
      %2181 = vmatmul.mubr.bf16.gmra.mrb[0].mxu0 %v2067
      %v2182 = vpop.f32.mrb[0].mxu0
      %v2183 = vadd.f32 0.0, %v2182
      %v2184 = vpop.f32.mrb[0].mxu0
      %v2185 = vpop.f32.mrb[0].mxu0
      %v2186 = vadd.f32 0.0, %v2185
      %v2187 = vpop.f32.mrb[0].mxu0
      %2188 = vmatprep.mubr.bf16.mxu0 0
      %2189 = vmatmul.mubr.bf16.gmra.mrb[0].mxu0 %v2070
      %v2190 = vpop.f32.mrb[0].mxu0
      %v2191 = vadd.f32 0.0, %v2190
      %v2192 = vpop.f32.mrb[0].mxu0
      %v2193 = vpop.f32.mrb[0].mxu0
      %v2194 = vadd.f32 0.0, %v2193
      %v2195 = vpop.f32.mrb[0].mxu0
      %2196 = vmatprep.mubr.bf16.mxu0 0
      %2197 = vmatmul.mubr.bf16.gmra.mrb[0].mxu0 %v2073
      %v2198 = vpop.f32.mrb[0].mxu0
      %v2199 = vadd.f32 0.0, %v2198
      %v2200 = vpop.f32.mrb[0].mxu0
      %v2201 = vpop.f32.mrb[0].mxu0
      %v2202 = vadd.f32 0.0, %v2201
      %v2203 = vpop.f32.mrb[0].mxu0
      %2204 = vmatprep.mubr.bf16.mxu0 0
      %2205 = vmatmul.mubr.bf16.gmra.mrb[0].mxu0 %v2076
      %v2206 = vpop.f32.mrb[0].mxu0
      %v2207 = vadd.f32 0.0, %v2206
      %v2208 = vpop.f32.mrb[0].mxu0
      %v2209 = vpop.f32.mrb[0].mxu0
      %v2210 = vadd.f32 0.0, %v2209
      %v2211 = vpop.f32.mrb[0].mxu0
      %2212 = vmatprep.mubr.bf16.mxu0 0
      %2213 = vmatmul.mubr.bf16.gmra.mrb[0].mxu0 %v2079
      %v2214 = vpop.f32.mrb[0].mxu0
      %v2215 = vadd.f32 0.0, %v2214
      %v2216 = vpop.f32.mrb[0].mxu0
      %v2217 = vpop.f32.mrb[0].mxu0
      %v2218 = vadd.f32 0.0, %v2217
      %v2219 = vpop.f32.mrb[0].mxu0
      %2220 = vmatprep.mubr.bf16.mxu0 0
      %2221 = vmatmul.mubr.bf16.gmra.mrb[0].mxu0 %v2082
      %v2222 = vpop.f32.mrb[0].mxu0
      %v2223 = vadd.f32 0.0, %v2222
      %v2224 = vpop.f32.mrb[0].mxu0
      %v2225 = vpop.f32.mrb[0].mxu0
      %v2226 = vadd.f32 0.0, %v2225
      %v2227 = vpop.f32.mrb[0].mxu0
      %2228 = vmatprep.mubr.bf16.mxu0 0
      %2229 = vmatmul.mubr.bf16.gmra.mrb[0].mxu0 %v2085
      %v2230 = vpop.f32.mrb[0].mxu0
      %v2231 = vadd.f32 0.0, %v2230
      %v2232 = vpop.f32.mrb[0].mxu0
      %v2233 = vpop.f32.mrb[0].mxu0
      %v2234 = vadd.f32 0.0, %v2233
      %v2235 = vpop.f32.mrb[0].mxu0
      %2236 = vmatprep.mubr.bf16.mxu0 0
      %2237 = vmatmul.mubr.bf16.gmra.mrb[0].mxu0 %v2088
      %v2238 = vpop.f32.mrb[0].mxu0
      %v2239 = vadd.f32 0.0, %v2238
      %v2240 = vpop.f32.mrb[0].mxu0
      %v2241 = vpop.f32.mrb[0].mxu0
      %v2242 = vadd.f32 0.0, %v2241
      %v2243 = vpop.f32.mrb[0].mxu0
      %2244 = vmatprep.mubr.bf16.mxu0 0
      %2245 = vmatmul.mubr.bf16.gmra.mrb[0].mxu0 %v2091
      %v2246 = vpop.f32.mrb[0].mxu0
      %v2247 = vadd.f32 0.0, %v2246
      %v2248 = vpop.f32.mrb[0].mxu0
      %v2249 = vpop.f32.mrb[0].mxu0
      %v2250 = vadd.f32 0.0, %v2249
      %v2251 = vpop.f32.mrb[0].mxu0
      %2252 = vmatprep.mubr.bf16.mxu0 0
      %2253 = vmatmul.mubr.bf16.gmra.mrb[0].mxu0 %v2094
      %v2254 = vpop.f32.mrb[0].mxu0
      %v2255 = vadd.f32 0.0, %v2254
      %v2256 = vpop.f32.mrb[0].mxu0
      %v2257 = vpop.f32.mrb[0].mxu0
      %v2258 = vadd.f32 0.0, %v2257
      %v2259 = vpop.f32.mrb[0].mxu0
      %2260 = vdwg.mxu0
      %2261 = vst [vmem:[%s208] sm:$0xff] %v2135
      %2262 = vst [vmem:[%s208 + $0x8] sm:$0xff] %v2138
      %2263 = vst [vmem:[%s208 + $0x10] sm:$0xff] %v2143
      %2264 = vst [vmem:[%s208 + $0x18] sm:$0xff] %v2146
      %2265 = vst [vmem:[%s208 + $0x20] sm:$0xff] %v2151
      %2266 = vst [vmem:[%s208 + $0x28] sm:$0xff] %v2154
      %2267 = vst [vmem:[%s208 + $0x30] sm:$0xff] %v2159
      %2268 = vst [vmem:[%s208 + $0x38] sm:$0xff] %v2162
      %2269 = vst [vmem:[%s208 + $0x40] sm:$0xff] %v2167
      %2270 = vst [vmem:[%s208 + $0x48] sm:$0xff] %v2170
      %2271 = vst [vmem:[%s208 + $0x50] sm:$0xff] %v2175
      %2272 = vst [vmem:[%s208 + $0x58] sm:$0xff] %v2178
      %2273 = vst [vmem:[%s208 + $0x60] sm:$0xff] %v2183
      %2274 = vst [vmem:[%s208 + $0x68] sm:$0xff] %v2186
      %2275 = vst [vmem:[%s208 + $0x70] sm:$0xff] %v2191
      %2276 = vst [vmem:[%s208 + $0x78] sm:$0xff] %v2194
      %2277 = vst [vmem:[%s208 + $0x80] sm:$0xff] %v2199
      %2278 = vst [vmem:[%s208 + $0x88] sm:$0xff] %v2202
      %2279 = vst [vmem:[%s208 + $0x90] sm:$0xff] %v2207
      %2280 = vst [vmem:[%s208 + $0x98] sm:$0xff] %v2210
      %2281 = vst [vmem:[%s208 + $0xa0] sm:$0xff] %v2215
      %2282 = vst [vmem:[%s208 + $0xa8] sm:$0xff] %v2218
      %2283 = vst [vmem:[%s208 + $0xb0] sm:$0xff] %v2223
      %2284 = vst [vmem:[%s208 + $0xb8] sm:$0xff] %v2226
      %2285 = vst [vmem:[%s208 + $0xc0] sm:$0xff] %v2231
      %2286 = vst [vmem:[%s208 + $0xc8] sm:$0xff] %v2234
      %2287 = vst [vmem:[%s208 + $0xd0] sm:$0xff] %v2239
      %2288 = vst [vmem:[%s208 + $0xd8] sm:$0xff] %v2242
      %2289 = vst [vmem:[%s208 + $0xe0] sm:$0xff] %v2247
      %2290 = vst [vmem:[%s208 + $0xe8] sm:$0xff] %v2250
      %2291 = vst [vmem:[%s208 + $0xf0] sm:$0xff] %v2255
      %2292 = vst [vmem:[%s208 + $0xf8] sm:$0xff] %v2258
      %v2293 = vadd.f32 %v2135, %v2138
      %v2294 = vadd.f32 %v2293, %v2143
      %v2295 = vadd.f32 %v2294, %v2146
      %v2296 = vadd.f32 %v2295, %v2151
      %v2297 = vadd.f32 %v2296, %v2154
      %v2298 = vadd.f32 %v2297, %v2159
      %v2299 = vadd.f32 %v2298, %v2162
      %v2300 = vadd.f32 %v2299, %v2167
      %v2301 = vadd.f32 %v2300, %v2170
      %v2302 = vadd.f32 %v2301, %v2175
      %v2303 = vadd.f32 %v2302, %v2178
      %v2304 = vadd.f32 %v2303, %v2183
      %v2305 = vadd.f32 %v2304, %v2186
      %v2306 = vadd.f32 %v2305, %v2191
      %v2307 = vadd.f32 %v2306, %v2194
      %v2308 = vadd.f32 %v2307, %v2199
      %v2309 = vadd.f32 %v2308, %v2202
      %v2310 = vadd.f32 %v2309, %v2207
      %v2311 = vadd.f32 %v2310, %v2210
      %v2312 = vadd.f32 %v2311, %v2215
      %v2313 = vadd.f32 %v2312, %v2218
      %v2314 = vadd.f32 %v2313, %v2223
      %v2315 = vadd.f32 %v2314, %v2226
      %v2316 = vadd.f32 %v2315, %v2231
      %v2317 = vadd.f32 %v2316, %v2234
      %v2318 = vadd.f32 %v2317, %v2239
      %v2319 = vadd.f32 %v2318, %v2242
      %v2320 = vadd.f32 %v2319, %v2247
      %v2321 = vadd.f32 %v2320, %v2250
      %v2322 = vadd.f32 %v2321, %v2255
      %v2323 = vadd.f32 %v2322, %v2258
      %v2324 = vrot.slane %v2323, 4
      %v2325 = vadd.f32 %v2323, %v2324
      %v2326 = vrot.slane %v2325, 2
      %v2327 = vadd.f32 %v2325, %v2326
      %v2328 = vrot.slane %v2327, 1
      %v2329 = vadd.f32 %v2327, %v2328
      %2330 = vst [vmem:[%s212] sm:$0x1] %v2329
      %v2331 = vmul.f32 %v2135, %v2135
      %v2332 = vmul.f32 %v2138, %v2138
      %v2333 = vmul.f32 %v2143, %v2143
      %v2334 = vmul.f32 %v2146, %v2146
      %v2335 = vmul.f32 %v2151, %v2151
      %v2336 = vmul.f32 %v2154, %v2154
      %v2337 = vmul.f32 %v2159, %v2159
      %v2338 = vmul.f32 %v2162, %v2162
      %v2339 = vmul.f32 %v2167, %v2167
      %v2340 = vmul.f32 %v2170, %v2170
      %v2341 = vmul.f32 %v2175, %v2175
      %v2342 = vmul.f32 %v2178, %v2178
      %v2343 = vmul.f32 %v2183, %v2183
      %v2344 = vmul.f32 %v2186, %v2186
      %v2345 = vmul.f32 %v2191, %v2191
      %v2346 = vmul.f32 %v2194, %v2194
      %v2347 = vmul.f32 %v2199, %v2199
      %v2348 = vmul.f32 %v2202, %v2202
      %v2349 = vmul.f32 %v2207, %v2207
      %v2350 = vmul.f32 %v2210, %v2210
      %v2351 = vmul.f32 %v2215, %v2215
      %v2352 = vmul.f32 %v2218, %v2218
      %v2353 = vmul.f32 %v2223, %v2223
      %v2354 = vmul.f32 %v2226, %v2226
      %v2355 = vmul.f32 %v2231, %v2231
      %v2356 = vmul.f32 %v2234, %v2234
      %v2357 = vmul.f32 %v2239, %v2239
      %v2358 = vmul.f32 %v2242, %v2242
      %v2359 = vmul.f32 %v2247, %v2247
      %v2360 = vmul.f32 %v2250, %v2250
      %v2361 = vmul.f32 %v2255, %v2255
      %v2362 = vmul.f32 %v2258, %v2258
      %v2363 = vadd.f32 %v2331, %v2332
      %v2364 = vadd.f32 %v2363, %v2333
      %v2365 = vadd.f32 %v2364, %v2334
      %v2366 = vadd.f32 %v2365, %v2335
      %v2367 = vadd.f32 %v2366, %v2336
      %v2368 = vadd.f32 %v2367, %v2337
      %v2369 = vadd.f32 %v2368, %v2338
      %v2370 = vadd.f32 %v2369, %v2339
      %v2371 = vadd.f32 %v2370, %v2340
      %v2372 = vadd.f32 %v2371, %v2341
      %v2373 = vadd.f32 %v2372, %v2342
      %v2374 = vadd.f32 %v2373, %v2343
      %v2375 = vadd.f32 %v2374, %v2344
      %v2376 = vadd.f32 %v2375, %v2345
      %v2377 = vadd.f32 %v2376, %v2346
      %v2378 = vadd.f32 %v2377, %v2347
      %v2379 = vadd.f32 %v2378, %v2348
      %v2380 = vadd.f32 %v2379, %v2349
      %v2381 = vadd.f32 %v2380, %v2350
      %v2382 = vadd.f32 %v2381, %v2351
      %v2383 = vadd.f32 %v2382, %v2352
      %v2384 = vadd.f32 %v2383, %v2353
      %v2385 = vadd.f32 %v2384, %v2354
      %v2386 = vadd.f32 %v2385, %v2355
      %v2387 = vadd.f32 %v2386, %v2356
      %v2388 = vadd.f32 %v2387, %v2357
      %v2389 = vadd.f32 %v2388, %v2358
      %v2390 = vadd.f32 %v2389, %v2359
      %v2391 = vadd.f32 %v2390, %v2360
      %v2392 = vadd.f32 %v2391, %v2361
      %v2393 = vadd.f32 %v2392, %v2362
      %v2394 = vrot.slane %v2393, 4
      %v2395 = vadd.f32 %v2393, %v2394
      %v2396 = vrot.slane %v2395, 2
      %v2397 = vadd.f32 %v2395, %v2396
      %v2398 = vrot.slane %v2397, 1
      %v2399 = vadd.f32 %v2397, %v2398
      %2400 = vst [vmem:[%s215] sm:$0x1] %v2399
      %s2401 = smul.u32 32, %s16
      %p2402 = scmp.lt.s32.totalorder %s2401, 63
      %s2403 = scalar_select %p2402, %s2401, 63
      %s2404 = smul.addr %s2403, 8
      %s2405 = scalar_lea.vmem %s2, %s2404
      %p2406 = scmp.lt.s32.totalorder %s16, 1
      %s2407 = scalar_select %p2406, %s16, 1
      %s2408 = scalar_lea.vmem %s3, %s2407
      %p2409 = scmp.lt.s32.totalorder %s16, 1
      %s2410 = scalar_select %p2409, %s16, 1
      %s2411 = scalar_lea.vmem %s4, %s2410
      // Predicated region
      $region29: #{conv_bn_relu.2} parent=27 // pred_check
        %p2412 = pneg %p81
      $region30: #{conv_bn_relu.2} parent=27 // pred_check_branch
        %2414 = sbr.rel (%p2412) target = $region32
      $region31: #{conv_bn_relu.2} parent=27 // pred_region
        %s2415 = smul.u32 32, %s16
      $region32: #{conv_bn_relu.2} parent=27 // pred_fallthru
        _
      // Predicated region
      $region33: #{conv_bn_relu.2} parent=27 // pred_check
        %p2416 = pneg %p107
      $region34: #{conv_bn_relu.2} parent=27 // pred_check_branch
        %2418 = sbr.rel (%p2416) target = $region36
      $region35: #{conv_bn_relu.2} parent=27 // pred_region
        _
      $region36: #{conv_bn_relu.2} parent=27 // pred_fallthru
        _
      // Predicated region
      $region37: #{conv_bn_relu.2} parent=27 // pred_check
        %p2419 = pneg %p133
      $region38: #{conv_bn_relu.2} parent=27 // pred_check_branch
        %2421 = sbr.rel (%p2419) target = $region40
      $region39: #{conv_bn_relu.2} parent=27 // pred_region
        _
      $region40: #{conv_bn_relu.2} parent=27 // pred_fallthru
        _
    $region28: #{conv_bn_relu.2} parent=5 // pred_fallthru
      _
    %p2422 = scmp.le.s32.totalorder 2, %s11
    // Predicated region
    $region41: #{conv_bn_relu.2} parent=5 // pred_check
      %p2423 = pneg %p2422
    $region42: #{conv_bn_relu.2} parent=5 // pred_check_branch
      %2425 = sbr.rel (%p2423) target = $region44
    $region43: #{conv_bn_relu.2} parent=5 // pred_region
      %s2426 = ssub.s32 %s11, 2
      // Predicated region
      $region45: #{conv_bn_relu.2} parent=43 // pred_check
        %p2427 = pneg %p87
      $region46: #{conv_bn_relu.2} parent=43 // pred_check_branch
        %2429 = sbr.rel (%p2427) target = $region48
      $region47: #{conv_bn_relu.2} parent=43 // pred_region
        %s2430 = smul.u32 32, %s17
        %p2431 = scmp.lt.s32.totalorder %s2430, 63
        %s2432 = scalar_select %p2431, %s2430, 63
        %s2433 = smul.addr %s2432, 8
        %s2434 = scalar_lea.vmem %s2, %s2433
      $region48: #{conv_bn_relu.2} parent=43 // pred_fallthru
        _
      // Predicated region
      $region49: #{conv_bn_relu.2} parent=43 // pred_check
        %p2435 = pneg %p113
      $region50: #{conv_bn_relu.2} parent=43 // pred_check_branch
        %2437 = sbr.rel (%p2435) target = $region52
      $region51: #{conv_bn_relu.2} parent=43 // pred_region
        %p2438 = scmp.lt.s32.totalorder %s17, 1
        %s2439 = scalar_select %p2438, %s17, 1
        %s2440 = scalar_lea.vmem %s3, %s2439
      $region52: #{conv_bn_relu.2} parent=43 // pred_fallthru
        _
      // Predicated region
      $region53: #{conv_bn_relu.2} parent=43 // pred_check
        %p2441 = pneg %p139
      $region54: #{conv_bn_relu.2} parent=43 // pred_check_branch
        %2443 = sbr.rel (%p2441) target = $region56
      $region55: #{conv_bn_relu.2} parent=43 // pred_region
        %p2444 = scmp.lt.s32.totalorder %s17, 1
        %s2445 = scalar_select %p2444, %s17, 1
        %s2446 = scalar_lea.vmem %s4, %s2445
      $region56: #{conv_bn_relu.2} parent=43 // pred_fallthru
        _
    $region44: #{conv_bn_relu.2} parent=5 // pred_fallthru
      _
  $region6: #{conv_bn_relu.2} parent=0 // loop_footer
    %s15 = sadd.s32 1, %s11
  $region7: #{conv_bn_relu.2} parent=0 // loop_footer_branch
    %10 = sbr.rel target = $region3
  $region8: #{conv_bn_relu.2} parent=0 // loop_exit
    _

</llo_original>
